<compile_context>
chip_gen: v7x
topology: tpu7x:2x2x1
jax: 0.10.0
libtpu: 0.0.40
codegen_flags: <defaults>
</compile_context>

<pallas_src>
import jax
import jax.numpy as jnp
from jax import lax
from jax.experimental import pallas as pl
from jax.experimental.pallas import tpu as pltpu


# ----------------------------------------------------------------------------- #
# Pallas kernel
# ----------------------------------------------------------------------------- #
def _decoder_rnn_kernel(x_ref,      # (T*B, Din)  f32, time-major flattened input
                        h0_ref,     # (B, H)      f32
                        c0_ref,     # (B, H)      f32
                        wih_ref,    # (Din, 4H)   f32  (= W_ih^T)
                        whh_ref,    # (H, 4H)     f32  (= W_hh^T)
                        b_ref,      # (1, 4H)     f32  (= b_ih + b_hh)
                        wout_ref,   # (H, Vp)     f32  (= W_out^T, lane-padded)
                        bout_ref,   # (1, Vp)     f32  (lane-padded)
                        out_ref,    # (T*B, Vp)   f32  output: logits (time-major)
                        hn_ref,     # (B, H)      f32  output: final h
                        cn_ref,     # (B, H)      f32  output: final c
                        ):
    B = h0_ref.shape[0]
    H = h0_ref.shape[1]
    T = x_ref.shape[0] // B

    # ---- Hoisted input projection: one well-shaped matmul + fused bias. ------ #
    gp = (
        jnp.dot(x_ref[...], wih_ref[...], preferred_element_type=jnp.float32)
        + b_ref[...]
    ).reshape(T, B, 4 * H)                                  # gate order i,f,g,o

    # Single-sigmoid gate activation:
    #   sigmoid lanes: s(x)
    #   tanh lanes (g gate): tanh(x) = 2*sigmoid(2x) - 1
    # -> pre-scale g lanes by 2, one sigmoid over the full (B,4H) tile, then
    #    fix up the g lanes with an FMA. Masks are hoisted out of the loop.
    lane = lax.broadcasted_iota(jnp.int32, (B, 4 * H), 1)
    g_mask = (lane >= 2 * H) & (lane < 3 * H)
    g_scale = jnp.where(g_mask, jnp.float32(2.0), jnp.float32(1.0))   # pre & post mul
    g_shift = jnp.where(g_mask, jnp.float32(-1.0), jnp.float32(0.0))  # post add

    # ---- Serial recurrence: only h @ W_hh + elementwise math per step. ------- #
    h = h0_ref[...]
    c = c0_ref[...]
    whh = whh_ref[...]          # loaded once; compiler keeps RHS resident

    hs = []
    for t in range(T):          # static unroll (T is small)
        gates = gp[t] + jnp.dot(h, whh, preferred_element_type=jnp.float32)
        s = jax.nn.sigmoid(gates * g_scale)                 # ONE EUP sigmoid per step
        act = s * g_scale + g_shift                         # tanh fixup on g lanes
        i_g = act[:, 0 * H:1 * H]
        f_g = act[:, 1 * H:2 * H]
        g_g = act[:, 2 * H:3 * H]
        o_g = act[:, 3 * H:4 * H]

        c = f_g * c + i_g * g_g
        h = o_g * jnp.tanh(c)
        hs.append(h)            # stays in vregs (~2 KiB total)

    hn_ref[...] = h
    cn_ref[...] = c

    # ---- Batched vocab projection: one matmul, one lane-dense store. --------- #
    h_all = jnp.concatenate(hs, axis=0)                     # (T*B, H), time-major
    out_ref[...] = (
        jnp.dot(h_all, wout_ref[...], preferred_element_type=jnp.float32)
        + bout_ref[...]
    )


# ----------------------------------------------------------------------------- #
# One-time parameter preparation (hoisted out of the per-call forward path).
# ----------------------------------------------------------------------------- #
def prepare_decoder_params(params):
    """Transpose / fuse / lane-pad weights once at param-load time."""
    H = params["w_hh"].shape[1]
    V = params["w_out"].shape[0]
    Vp = ((V + 127) // 128) * 128                           # lane-dense padded vocab

    wout_p = jnp.zeros((H, Vp), jnp.float32).at[:, :V].set(
        jnp.transpose(params["w_out"]).astype(jnp.float32))
    bout_p = jnp.zeros((1, Vp), jnp.float32).at[:, :V].set(
        params["b_out"].reshape(1, V).astype(jnp.float32))

    return {
        "wih_t": jnp.transpose(params["w_ih"]).astype(jnp.float32),   # (Din, 4H)
        "whh_t": jnp.transpose(params["w_hh"]).astype(jnp.float32),   # (H, 4H)
        "b": (params["b_ih"] + params["b_hh"]).reshape(1, 4 * H).astype(jnp.float32),
        "wout_p": wout_p,                                              # (H, Vp)
        "bout_p": bout_p,                                              # (1, Vp)
        "H": H,
        "V": V,
        "Vp": Vp,
    }


# ----------------------------------------------------------------------------- #
# Wrapper matching DecoderRNN.forward
# ----------------------------------------------------------------------------- #
def decoder_rnn_forward(x_btd, hidden, prep):
    """Forward pass matching DecoderRNN.forward.

    Args:
      x_btd:  (B, T, input_size + embedding_size) float32, batch_first input.
      hidden: None, or tuple (h0, c0) each of shape (1, B, H) (PyTorch LSTM convention).
      prep:   output of prepare_decoder_params(params).
    Returns:
      logits (B, T, V), (h_n, c_n) each (1, B, H).
    """
    B, T, Din = x_btd.shape
    H, V, Vp = prep["H"], prep["V"], prep["Vp"]

    if hidden is None:
        h0 = jnp.zeros((B, H), jnp.float32)
        c0 = jnp.zeros((B, H), jnp.float32)
    else:
        h0 = hidden[0].reshape(B, H).astype(jnp.float32)
        c0 = hidden[1].reshape(B, H).astype(jnp.float32)

    # Time-major flattened input so the hoisted projection is one matmul and
    # the recurrence indexes gp[t] along the leading axis.
    x2 = jnp.transpose(x_btd.astype(jnp.float32), (1, 0, 2)).reshape(T * B, Din)

    vmem = pl.BlockSpec(memory_space=pltpu.MemorySpace.VMEM)

    logits2d, h_n, c_n = pl.pallas_call(
        _decoder_rnn_kernel,
        out_shape=(
            jax.ShapeDtypeStruct((T * B, Vp), jnp.float32),
            jax.ShapeDtypeStruct((B, H), jnp.float32),
            jax.ShapeDtypeStruct((B, H), jnp.float32),
        ),
        in_specs=[vmem] * 8,
        out_specs=(vmem, vmem, vmem),
    )(x2, h0, c0, prep["wih_t"], prep["whh_t"], prep["b"],
      prep["wout_p"], prep["bout_p"])

    # Un-pad and restore batch_first layout (negligible at these sizes).
    logits = jnp.transpose(logits2d.reshape(T, B, Vp)[:, :, :V], (1, 0, 2))
    return logits, (h_n[None, ...], c_n[None, ...])


# ----------------------------------------------------------------------------- #
# Pure-JAX reference (mirrors torch.nn.LSTM + nn.Linear) for a correctness check.
# ----------------------------------------------------------------------------- #
def decoder_rnn_reference(x_btd, hidden, params):
    B, T, Din = x_btd.shape
    H = params["w_hh"].shape[1]
    if hidden is None:
        h = jnp.zeros((B, H), jnp.float32)
        c = jnp.zeros((B, H), jnp.float32)
    else:
        h = hidden[0].reshape(B, H)
        c = hidden[1].reshape(B, H)
    wih_t = params["w_ih"].T
    whh_t = params["w_hh"].T
    b = params["b_ih"] + params["b_hh"]
    outs = []
    for t in range(T):
        g = x_btd[:, t, :] @ wih_t + h @ whh_t + b
        i_g = jax.nn.sigmoid(g[:, 0 * H:1 * H])
        f_g = jax.nn.sigmoid(g[:, 1 * H:2 * H])
        g_g = jnp.tanh(g[:, 2 * H:3 * H])
        o_g = jax.nn.sigmoid(g[:, 3 * H:4 * H])
        c = f_g * c + i_g * g_g
        h = o_g * jnp.tanh(c)
        outs.append(h @ params["w_out"].T + params["b_out"])
    logits = jnp.stack(outs, axis=1)
    return logits, (h[None, ...], c[None, ...])


# ----------------------------------------------------------------------------- #
# Deterministic parameter init (PyTorch-style uniform(-1/sqrt(H), 1/sqrt(H))).
# ----------------------------------------------------------------------------- #
def init_params(key, vocab_size, input_size, embedding_size):
    H = embedding_size
    Din = input_size + embedding_size
    k = 1.0 / jnp.sqrt(jnp.float32(H))
    keys = jax.random.split(key, 7)
    uni = lambda kk, shape: jax.random.uniform(kk, shape, jnp.float32, -k, k)
    return {
        # nn.Embedding(len(vocab), embedding_size): unused in forward(), kept for fidelity.
        "embedding": jax.random.normal(keys[0], (vocab_size, embedding_size), jnp.float32),
        "w_ih": uni(keys[1], (4 * H, Din)),
        "w_hh": uni(keys[2], (4 * H, H)),
        "b_ih": uni(keys[3], (4 * H,)),
        "b_hh": uni(keys[4], (4 * H,)),
        "w_out": uni(keys[5], (vocab_size, H)),
        "b_out": uni(keys[6], (vocab_size,)),
    }


if __name__ == "__main__":
    # Small, self-consistent sizes.
    vocab = [f"tok{i}" for i in range(20)]       # len(vocab) = 20
    vocab_size = len(vocab)
    input_size = 16
    embedding_size = 32                           # == LSTM hidden size
    B, T = 2, 8
    Din = input_size + embedding_size             # LSTM input feature size

    key = jax.random.PRNGKey(0)
    k_par, k_x, k_h, k_c = jax.random.split(key, 4)
    params = init_params(k_par, vocab_size, input_size, embedding_size)
    prep = prepare_decoder_params(params)         # one-time weight prep (hoisted)

    x = jax.random.normal(k_x, (B, T, Din), jnp.float32)
    h0 = jax.random.normal(k_h, (1, B, embedding_size), jnp.float32)
    c0 = jax.random.normal(k_c, (1, B, embedding_size), jnp.float32)

    # Case 1: hidden provided.
    logits, (h_n, c_n) = decoder_rnn_forward(x, (h0, c0), prep)
    jax.block_until_ready((logits, h_n, c_n))

    # Case 2: hidden is None (matches the `if hidden is None` branch).
    logits0, (h_n0, c_n0) = decoder_rnn_forward(x, None, prep)
    jax.block_until_ready((logits0, h_n0, c_n0))

    # Correctness check against a pure-JAX LSTM reference.
    ref_logits, (ref_h, ref_c) = decoder_rnn_reference(x, (h0, c0), params)
    ref_logits0, (ref_h0, ref_c0) = decoder_rnn_reference(x, None, params)

    assert logits.shape == (B, T, vocab_size)
    assert h_n.shape == (1, B, embedding_size) and c_n.shape == (1, B, embedding_size)
    assert jnp.allclose(logits, ref_logits, atol=1e-4, rtol=1e-4)
    assert jnp.allclose(h_n, ref_h, atol=1e-4, rtol=1e-4)
    assert jnp.allclose(c_n, ref_c, atol=1e-4, rtol=1e-4)
    assert jnp.allclose(logits0, ref_logits0, atol=1e-4, rtol=1e-4)
    assert jnp.allclose(h_n0, ref_h0, atol=1e-4, rtol=1e-4)
    assert jnp.allclose(c_n0, ref_c0, atol=1e-4, rtol=1e-4)

    print("KERNEL_OK")
</pallas_src>

<mosaic_0001>
module attributes {stable_mosaic.version = 11 : i64} {
  func.func @_decoder_rnn_kernel(%arg0: memref<16x48xf32, #tpu.memory_space<vmem>>, %arg1: memref<2x32xf32, #tpu.memory_space<vmem>>, %arg2: memref<2x32xf32, #tpu.memory_space<vmem>>, %arg3: memref<48x128xf32, #tpu.memory_space<vmem>>, %arg4: memref<32x128xf32, #tpu.memory_space<vmem>>, %arg5: memref<1x128xf32, #tpu.memory_space<vmem>>, %arg6: memref<32x128xf32, #tpu.memory_space<vmem>>, %arg7: memref<1x128xf32, #tpu.memory_space<vmem>>, %arg8: memref<16x128xf32, #tpu.memory_space<vmem>>, %arg9: memref<2x32xf32, #tpu.memory_space<vmem>>, %arg10: memref<2x32xf32, #tpu.memory_space<vmem>>) attributes {dimension_semantics = [], scalar_prefetch = 0 : i64, scratch_operands = 0 : i64, tpu.core_type = #tpu.core_type<tc>} {
    %c0 = arith.constant 0 : index
    %c0_0 = arith.constant 0 : index
    %0 = vector.load %arg0[%c0, %c0_0] : memref<16x48xf32, #tpu.memory_space<vmem>>, vector<16x48xf32>
    %c0_1 = arith.constant 0 : index
    %c0_2 = arith.constant 0 : index
    %1 = vector.load %arg3[%c0_1, %c0_2] : memref<48x128xf32, #tpu.memory_space<vmem>>, vector<48x128xf32>
    %cst = arith.constant dense<0.000000e+00> : vector<16x128xf32>
    %2 = tpu.matmul %0, %1, %cst {dimension_numbers = #tpu.dot_dimension_numbers<[1], [0], [0], [1], [0, 0, 1, 1], [], []>} : vector<16x48xf32>, vector<48x128xf32>, vector<16x128xf32> -> vector<16x128xf32>
    %c0_3 = arith.constant 0 : index
    %c0_4 = arith.constant 0 : index
    %3 = vector.load %arg5[%c0_3, %c0_4] : memref<1x128xf32, #tpu.memory_space<vmem>>, vector<1x128xf32>
    %4 = vector.broadcast %3 : vector<1x128xf32> to vector<16x128xf32>
    %5 = arith.addf %2, %4 : vector<16x128xf32>
    %6 = vector.shape_cast %5 : vector<16x128xf32> to vector<8x2x128xf32>
    %7 = tpu.iota {dimensions = array<i32: 1>} : vector<2x128xi32>
    %c64_i32 = arith.constant 64 : i32
    %8 = vector.broadcast %c64_i32 : i32 to vector<2x128xi32>
    %9 = arith.cmpi sge, %7, %8 : vector<2x128xi32>
    %c96_i32 = arith.constant 96 : i32
    %10 = vector.broadcast %c96_i32 : i32 to vector<2x128xi32>
    %11 = arith.cmpi slt, %7, %10 : vector<2x128xi32>
    %12 = arith.andi %9, %11 : vector<2x128xi1>
    %cst_5 = arith.constant 2.000000e+00 : f32
    %cst_6 = arith.constant 1.000000e+00 : f32
    %13 = vector.broadcast %cst_5 : f32 to vector<2x128xf32>
    %14 = vector.broadcast %cst_6 : f32 to vector<2x128xf32>
    %15 = arith.select %12, %13, %14 : vector<2x128xi1>, vector<2x128xf32>
    %cst_7 = arith.constant -1.000000e+00 : f32
    %cst_8 = arith.constant 0.000000e+00 : f32
    %16 = vector.broadcast %cst_7 : f32 to vector<2x128xf32>
    %17 = vector.broadcast %cst_8 : f32 to vector<2x128xf32>
    %18 = arith.select %12, %16, %17 : vector<2x128xi1>, vector<2x128xf32>
    %c0_9 = arith.constant 0 : index
    %c0_10 = arith.constant 0 : index
    %19 = vector.load %arg1[%c0_9, %c0_10] : memref<2x32xf32, #tpu.memory_space<vmem>>, vector<2x32xf32>
    %c0_11 = arith.constant 0 : index
    %c0_12 = arith.constant 0 : index
    %20 = vector.load %arg2[%c0_11, %c0_12] : memref<2x32xf32, #tpu.memory_space<vmem>>, vector<2x32xf32>
    %c0_13 = arith.constant 0 : index
    %c0_14 = arith.constant 0 : index
    %21 = vector.load %arg4[%c0_13, %c0_14] : memref<32x128xf32, #tpu.memory_space<vmem>>, vector<32x128xf32>
    %22 = vector.extract_strided_slice %6 {offsets = [0, 0, 0], sizes = [1, 2, 128], strides = [1, 1, 1]} : vector<8x2x128xf32> to vector<1x2x128xf32>
    %23 = vector.shape_cast %22 : vector<1x2x128xf32> to vector<2x128xf32>
    %cst_15 = arith.constant dense<0.000000e+00> : vector<2x128xf32>
    %24 = tpu.matmul %19, %21, %cst_15 {dimension_numbers = #tpu.dot_dimension_numbers<[1], [0], [0], [1], [0, 0, 1, 1], [], []>} : vector<2x32xf32>, vector<32x128xf32>, vector<2x128xf32> -> vector<2x128xf32>
    %25 = arith.addf %23, %24 : vector<2x128xf32>
    %26 = arith.mulf %25, %15 : vector<2x128xf32>
    %27 = arith.negf %26 : vector<2x128xf32>
    %28 = math.exp %27 : vector<2x128xf32>
    %cst_16 = arith.constant 1.000000e+00 : f32
    %29 = vector.broadcast %cst_16 : f32 to vector<2x128xf32>
    %30 = arith.addf %29, %28 : vector<2x128xf32>
    %31 = arith.divf %29, %30 : vector<2x128xf32>
    %32 = arith.mulf %31, %15 : vector<2x128xf32>
    %33 = arith.addf %32, %18 : vector<2x128xf32>
    %34 = vector.extract_strided_slice %33 {offsets = [0, 0], sizes = [2, 32], strides = [1, 1]} : vector<2x128xf32> to vector<2x32xf32>
    %35 = vector.extract_strided_slice %33 {offsets = [0, 32], sizes = [2, 32], strides = [1, 1]} : vector<2x128xf32> to vector<2x32xf32>
    %36 = vector.extract_strided_slice %33 {offsets = [0, 64], sizes = [2, 32], strides = [1, 1]} : vector<2x128xf32> to vector<2x32xf32>
    %37 = vector.extract_strided_slice %33 {offsets = [0, 96], sizes = [2, 32], strides = [1, 1]} : vector<2x128xf32> to vector<2x32xf32>
    %38 = arith.mulf %35, %20 : vector<2x32xf32>
    %39 = arith.mulf %34, %36 : vector<2x32xf32>
    %40 = arith.addf %38, %39 : vector<2x32xf32>
    %41 = math.tanh %40 : vector<2x32xf32>
    %42 = arith.mulf %37, %41 : vector<2x32xf32>
    %43 = vector.extract_strided_slice %6 {offsets = [1, 0, 0], sizes = [1, 2, 128], strides = [1, 1, 1]} : vector<8x2x128xf32> to vector<1x2x128xf32>
    %44 = vector.shape_cast %43 : vector<1x2x128xf32> to vector<2x128xf32>
    %cst_17 = arith.constant dense<0.000000e+00> : vector<2x128xf32>
    %45 = tpu.matmul %42, %21, %cst_17 {dimension_numbers = #tpu.dot_dimension_numbers<[1], [0], [0], [1], [0, 0, 1, 1], [], []>} : vector<2x32xf32>, vector<32x128xf32>, vector<2x128xf32> -> vector<2x128xf32>
    %46 = arith.addf %44, %45 : vector<2x128xf32>
    %47 = arith.mulf %46, %15 : vector<2x128xf32>
    %48 = arith.negf %47 : vector<2x128xf32>
    %49 = math.exp %48 : vector<2x128xf32>
    %cst_18 = arith.constant 1.000000e+00 : f32
    %50 = vector.broadcast %cst_18 : f32 to vector<2x128xf32>
    %51 = arith.addf %50, %49 : vector<2x128xf32>
    %52 = arith.divf %50, %51 : vector<2x128xf32>
    %53 = arith.mulf %52, %15 : vector<2x128xf32>
    %54 = arith.addf %53, %18 : vector<2x128xf32>
    %55 = vector.extract_strided_slice %54 {offsets = [0, 0], sizes = [2, 32], strides = [1, 1]} : vector<2x128xf32> to vector<2x32xf32>
    %56 = vector.extract_strided_slice %54 {offsets = [0, 32], sizes = [2, 32], strides = [1, 1]} : vector<2x128xf32> to vector<2x32xf32>
    %57 = vector.extract_strided_slice %54 {offsets = [0, 64], sizes = [2, 32], strides = [1, 1]} : vector<2x128xf32> to vector<2x32xf32>
    %58 = vector.extract_strided_slice %54 {offsets = [0, 96], sizes = [2, 32], strides = [1, 1]} : vector<2x128xf32> to vector<2x32xf32>
    %59 = arith.mulf %56, %40 : vector<2x32xf32>
    %60 = arith.mulf %55, %57 : vector<2x32xf32>
    %61 = arith.addf %59, %60 : vector<2x32xf32>
    %62 = math.tanh %61 : vector<2x32xf32>
    %63 = arith.mulf %58, %62 : vector<2x32xf32>
    %64 = vector.extract_strided_slice %6 {offsets = [2, 0, 0], sizes = [1, 2, 128], strides = [1, 1, 1]} : vector<8x2x128xf32> to vector<1x2x128xf32>
    %65 = vector.shape_cast %64 : vector<1x2x128xf32> to vector<2x128xf32>
    %cst_19 = arith.constant dense<0.000000e+00> : vector<2x128xf32>
    %66 = tpu.matmul %63, %21, %cst_19 {dimension_numbers = #tpu.dot_dimension_numbers<[1], [0], [0], [1], [0, 0, 1, 1], [], []>} : vector<2x32xf32>, vector<32x128xf32>, vector<2x128xf32> -> vector<2x128xf32>
    %67 = arith.addf %65, %66 : vector<2x128xf32>
    %68 = arith.mulf %67, %15 : vector<2x128xf32>
    %69 = arith.negf %68 : vector<2x128xf32>
    %70 = math.exp %69 : vector<2x128xf32>
    %cst_20 = arith.constant 1.000000e+00 : f32
    %71 = vector.broadcast %cst_20 : f32 to vector<2x128xf32>
    %72 = arith.addf %71, %70 : vector<2x128xf32>
    %73 = arith.divf %71, %72 : vector<2x128xf32>
    %74 = arith.mulf %73, %15 : vector<2x128xf32>
    %75 = arith.addf %74, %18 : vector<2x128xf32>
    %76 = vector.extract_strided_slice %75 {offsets = [0, 0], sizes = [2, 32], strides = [1, 1]} : vector<2x128xf32> to vector<2x32xf32>
    %77 = vector.extract_strided_slice %75 {offsets = [0, 32], sizes = [2, 32], strides = [1, 1]} : vector<2x128xf32> to vector<2x32xf32>
    %78 = vector.extract_strided_slice %75 {offsets = [0, 64], sizes = [2, 32], strides = [1, 1]} : vector<2x128xf32> to vector<2x32xf32>
    %79 = vector.extract_strided_slice %75 {offsets = [0, 96], sizes = [2, 32], strides = [1, 1]} : vector<2x128xf32> to vector<2x32xf32>
    %80 = arith.mulf %77, %61 : vector<2x32xf32>
    %81 = arith.mulf %76, %78 : vector<2x32xf32>
    %82 = arith.addf %80, %81 : vector<2x32xf32>
    %83 = math.tanh %82 : vector<2x32xf32>
    %84 = arith.mulf %79, %83 : vector<2x32xf32>
    %85 = vector.extract_strided_slice %6 {offsets = [3, 0, 0], sizes = [1, 2, 128], strides = [1, 1, 1]} : vector<8x2x128xf32> to vector<1x2x128xf32>
    %86 = vector.shape_cast %85 : vector<1x2x128xf32> to vector<2x128xf32>
    %cst_21 = arith.constant dense<0.000000e+00> : vector<2x128xf32>
    %87 = tpu.matmul %84, %21, %cst_21 {dimension_numbers = #tpu.dot_dimension_numbers<[1], [0], [0], [1], [0, 0, 1, 1], [], []>} : vector<2x32xf32>, vector<32x128xf32>, vector<2x128xf32> -> vector<2x128xf32>
    %88 = arith.addf %86, %87 : vector<2x128xf32>
    %89 = arith.mulf %88, %15 : vector<2x128xf32>
    %90 = arith.negf %89 : vector<2x128xf32>
    %91 = math.exp %90 : vector<2x128xf32>
    %cst_22 = arith.constant 1.000000e+00 : f32
    %92 = vector.broadcast %cst_22 : f32 to vector<2x128xf32>
    %93 = arith.addf %92, %91 : vector<2x128xf32>
    %94 = arith.divf %92, %93 : vector<2x128xf32>
    %95 = arith.mulf %94, %15 : vector<2x128xf32>
    %96 = arith.addf %95, %18 : vector<2x128xf32>
    %97 = vector.extract_strided_slice %96 {offsets = [0, 0], sizes = [2, 32], strides = [1, 1]} : vector<2x128xf32> to vector<2x32xf32>
    %98 = vector.extract_strided_slice %96 {offsets = [0, 32], sizes = [2, 32], strides = [1, 1]} : vector<2x128xf32> to vector<2x32xf32>
    %99 = vector.extract_strided_slice %96 {offsets = [0, 64], sizes = [2, 32], strides = [1, 1]} : vector<2x128xf32> to vector<2x32xf32>
    %100 = vector.extract_strided_slice %96 {offsets = [0, 96], sizes = [2, 32], strides = [1, 1]} : vector<2x128xf32> to vector<2x32xf32>
    %101 = arith.mulf %98, %82 : vector<2x32xf32>
    %102 = arith.mulf %97, %99 : vector<2x32xf32>
    %103 = arith.addf %101, %102 : vector<2x32xf32>
    %104 = math.tanh %103 : vector<2x32xf32>
    %105 = arith.mulf %100, %104 : vector<2x32xf32>
    %106 = vector.extract_strided_slice %6 {offsets = [4, 0, 0], sizes = [1, 2, 128], strides = [1, 1, 1]} : vector<8x2x128xf32> to vector<1x2x128xf32>
    %107 = vector.shape_cast %106 : vector<1x2x128xf32> to vector<2x128xf32>
    %cst_23 = arith.constant dense<0.000000e+00> : vector<2x128xf32>
    %108 = tpu.matmul %105, %21, %cst_23 {dimension_numbers = #tpu.dot_dimension_numbers<[1], [0], [0], [1], [0, 0, 1, 1], [], []>} : vector<2x32xf32>, vector<32x128xf32>, vector<2x128xf32> -> vector<2x128xf32>
    %109 = arith.addf %107, %108 : vector<2x128xf32>
    %110 = arith.mulf %109, %15 : vector<2x128xf32>
    %111 = arith.negf %110 : vector<2x128xf32>
    %112 = math.exp %111 : vector<2x128xf32>
    %cst_24 = arith.constant 1.000000e+00 : f32
    %113 = vector.broadcast %cst_24 : f32 to vector<2x128xf32>
    %114 = arith.addf %113, %112 : vector<2x128xf32>
    %115 = arith.divf %113, %114 : vector<2x128xf32>
    %116 = arith.mulf %115, %15 : vector<2x128xf32>
    %117 = arith.addf %116, %18 : vector<2x128xf32>
    %118 = vector.extract_strided_slice %117 {offsets = [0, 0], sizes = [2, 32], strides = [1, 1]} : vector<2x128xf32> to vector<2x32xf32>
    %119 = vector.extract_strided_slice %117 {offsets = [0, 32], sizes = [2, 32], strides = [1, 1]} : vector<2x128xf32> to vector<2x32xf32>
    %120 = vector.extract_strided_slice %117 {offsets = [0, 64], sizes = [2, 32], strides = [1, 1]} : vector<2x128xf32> to vector<2x32xf32>
    %121 = vector.extract_strided_slice %117 {offsets = [0, 96], sizes = [2, 32], strides = [1, 1]} : vector<2x128xf32> to vector<2x32xf32>
    %122 = arith.mulf %119, %103 : vector<2x32xf32>
    %123 = arith.mulf %118, %120 : vector<2x32xf32>
    %124 = arith.addf %122, %123 : vector<2x32xf32>
    %125 = math.tanh %124 : vector<2x32xf32>
    %126 = arith.mulf %121, %125 : vector<2x32xf32>
    %127 = vector.extract_strided_slice %6 {offsets = [5, 0, 0], sizes = [1, 2, 128], strides = [1, 1, 1]} : vector<8x2x128xf32> to vector<1x2x128xf32>
    %128 = vector.shape_cast %127 : vector<1x2x128xf32> to vector<2x128xf32>
    %cst_25 = arith.constant dense<0.000000e+00> : vector<2x128xf32>
    %129 = tpu.matmul %126, %21, %cst_25 {dimension_numbers = #tpu.dot_dimension_numbers<[1], [0], [0], [1], [0, 0, 1, 1], [], []>} : vector<2x32xf32>, vector<32x128xf32>, vector<2x128xf32> -> vector<2x128xf32>
    %130 = arith.addf %128, %129 : vector<2x128xf32>
    %131 = arith.mulf %130, %15 : vector<2x128xf32>
    %132 = arith.negf %131 : vector<2x128xf32>
    %133 = math.exp %132 : vector<2x128xf32>
    %cst_26 = arith.constant 1.000000e+00 : f32
    %134 = vector.broadcast %cst_26 : f32 to vector<2x128xf32>
    %135 = arith.addf %134, %133 : vector<2x128xf32>
    %136 = arith.divf %134, %135 : vector<2x128xf32>
    %137 = arith.mulf %136, %15 : vector<2x128xf32>
    %138 = arith.addf %137, %18 : vector<2x128xf32>
    %139 = vector.extract_strided_slice %138 {offsets = [0, 0], sizes = [2, 32], strides = [1, 1]} : vector<2x128xf32> to vector<2x32xf32>
    %140 = vector.extract_strided_slice %138 {offsets = [0, 32], sizes = [2, 32], strides = [1, 1]} : vector<2x128xf32> to vector<2x32xf32>
    %141 = vector.extract_strided_slice %138 {offsets = [0, 64], sizes = [2, 32], strides = [1, 1]} : vector<2x128xf32> to vector<2x32xf32>
    %142 = vector.extract_strided_slice %138 {offsets = [0, 96], sizes = [2, 32], strides = [1, 1]} : vector<2x128xf32> to vector<2x32xf32>
    %143 = arith.mulf %140, %124 : vector<2x32xf32>
    %144 = arith.mulf %139, %141 : vector<2x32xf32>
    %145 = arith.addf %143, %144 : vector<2x32xf32>
    %146 = math.tanh %145 : vector<2x32xf32>
    %147 = arith.mulf %142, %146 : vector<2x32xf32>
    %148 = vector.extract_strided_slice %6 {offsets = [6, 0, 0], sizes = [1, 2, 128], strides = [1, 1, 1]} : vector<8x2x128xf32> to vector<1x2x128xf32>
    %149 = vector.shape_cast %148 : vector<1x2x128xf32> to vector<2x128xf32>
    %cst_27 = arith.constant dense<0.000000e+00> : vector<2x128xf32>
    %150 = tpu.matmul %147, %21, %cst_27 {dimension_numbers = #tpu.dot_dimension_numbers<[1], [0], [0], [1], [0, 0, 1, 1], [], []>} : vector<2x32xf32>, vector<32x128xf32>, vector<2x128xf32> -> vector<2x128xf32>
    %151 = arith.addf %149, %150 : vector<2x128xf32>
    %152 = arith.mulf %151, %15 : vector<2x128xf32>
    %153 = arith.negf %152 : vector<2x128xf32>
    %154 = math.exp %153 : vector<2x128xf32>
    %cst_28 = arith.constant 1.000000e+00 : f32
    %155 = vector.broadcast %cst_28 : f32 to vector<2x128xf32>
    %156 = arith.addf %155, %154 : vector<2x128xf32>
    %157 = arith.divf %155, %156 : vector<2x128xf32>
    %158 = arith.mulf %157, %15 : vector<2x128xf32>
    %159 = arith.addf %158, %18 : vector<2x128xf32>
    %160 = vector.extract_strided_slice %159 {offsets = [0, 0], sizes = [2, 32], strides = [1, 1]} : vector<2x128xf32> to vector<2x32xf32>
    %161 = vector.extract_strided_slice %159 {offsets = [0, 32], sizes = [2, 32], strides = [1, 1]} : vector<2x128xf32> to vector<2x32xf32>
    %162 = vector.extract_strided_slice %159 {offsets = [0, 64], sizes = [2, 32], strides = [1, 1]} : vector<2x128xf32> to vector<2x32xf32>
    %163 = vector.extract_strided_slice %159 {offsets = [0, 96], sizes = [2, 32], strides = [1, 1]} : vector<2x128xf32> to vector<2x32xf32>
    %164 = arith.mulf %161, %145 : vector<2x32xf32>
    %165 = arith.mulf %160, %162 : vector<2x32xf32>
    %166 = arith.addf %164, %165 : vector<2x32xf32>
    %167 = math.tanh %166 : vector<2x32xf32>
    %168 = arith.mulf %163, %167 : vector<2x32xf32>
    %169 = vector.extract_strided_slice %6 {offsets = [7, 0, 0], sizes = [1, 2, 128], strides = [1, 1, 1]} : vector<8x2x128xf32> to vector<1x2x128xf32>
    %170 = vector.shape_cast %169 : vector<1x2x128xf32> to vector<2x128xf32>
    %cst_29 = arith.constant dense<0.000000e+00> : vector<2x128xf32>
    %171 = tpu.matmul %168, %21, %cst_29 {dimension_numbers = #tpu.dot_dimension_numbers<[1], [0], [0], [1], [0, 0, 1, 1], [], []>} : vector<2x32xf32>, vector<32x128xf32>, vector<2x128xf32> -> vector<2x128xf32>
    %172 = arith.addf %170, %171 : vector<2x128xf32>
    %173 = arith.mulf %172, %15 : vector<2x128xf32>
    %174 = arith.negf %173 : vector<2x128xf32>
    %175 = math.exp %174 : vector<2x128xf32>
    %cst_30 = arith.constant 1.000000e+00 : f32
    %176 = vector.broadcast %cst_30 : f32 to vector<2x128xf32>
    %177 = arith.addf %176, %175 : vector<2x128xf32>
    %178 = arith.divf %176, %177 : vector<2x128xf32>
    %179 = arith.mulf %178, %15 : vector<2x128xf32>
    %180 = arith.addf %179, %18 : vector<2x128xf32>
    %181 = vector.extract_strided_slice %180 {offsets = [0, 0], sizes = [2, 32], strides = [1, 1]} : vector<2x128xf32> to vector<2x32xf32>
    %182 = vector.extract_strided_slice %180 {offsets = [0, 32], sizes = [2, 32], strides = [1, 1]} : vector<2x128xf32> to vector<2x32xf32>
    %183 = vector.extract_strided_slice %180 {offsets = [0, 64], sizes = [2, 32], strides = [1, 1]} : vector<2x128xf32> to vector<2x32xf32>
    %184 = vector.extract_strided_slice %180 {offsets = [0, 96], sizes = [2, 32], strides = [1, 1]} : vector<2x128xf32> to vector<2x32xf32>
    %185 = arith.mulf %182, %166 : vector<2x32xf32>
    %186 = arith.mulf %181, %183 : vector<2x32xf32>
    %187 = arith.addf %185, %186 : vector<2x32xf32>
    %188 = math.tanh %187 : vector<2x32xf32>
    %189 = arith.mulf %184, %188 : vector<2x32xf32>
    %c0_31 = arith.constant 0 : index
    %c0_32 = arith.constant 0 : index
    %190 = vector.load %arg9[%c0_31, %c0_32] : memref<2x32xf32, #tpu.memory_space<vmem>>, vector<2x32xf32>
    tpu.vector_store %arg9[%c0_31, %c0_32], %189 {strides = array<i32>} : memref<2x32xf32, #tpu.memory_space<vmem>>, vector<2x32xf32>,
    %c0_33 = arith.constant 0 : index
    %c0_34 = arith.constant 0 : index
    %191 = vector.load %arg10[%c0_33, %c0_34] : memref<2x32xf32, #tpu.memory_space<vmem>>, vector<2x32xf32>
    tpu.vector_store %arg10[%c0_33, %c0_34], %187 {strides = array<i32>} : memref<2x32xf32, #tpu.memory_space<vmem>>, vector<2x32xf32>,
    %192 = tpu.concatenate %42, %63, %84, %105, %126, %147, %168, %189 in 0 : vector<2x32xf32>, vector<2x32xf32>, vector<2x32xf32>, vector<2x32xf32>, vector<2x32xf32>, vector<2x32xf32>, vector<2x32xf32>, vector<2x32xf32> -> vector<16x32xf32>
    %c0_35 = arith.constant 0 : index
    %c0_36 = arith.constant 0 : index
    %193 = vector.load %arg6[%c0_35, %c0_36] : memref<32x128xf32, #tpu.memory_space<vmem>>, vector<32x128xf32>
    %cst_37 = arith.constant dense<0.000000e+00> : vector<16x128xf32>
    %194 = tpu.matmul %192, %193, %cst_37 {dimension_numbers = #tpu.dot_dimension_numbers<[1], [0], [0], [1], [0, 0, 1, 1], [], []>} : vector<16x32xf32>, vector<32x128xf32>, vector<16x128xf32> -> vector<16x128xf32>
    %c0_38 = arith.constant 0 : index
    %c0_39 = arith.constant 0 : index
    %195 = vector.load %arg7[%c0_38, %c0_39] : memref<1x128xf32, #tpu.memory_space<vmem>>, vector<1x128xf32>
    %196 = vector.broadcast %195 : vector<1x128xf32> to vector<16x128xf32>
    %197 = arith.addf %194, %196 : vector<16x128xf32>
    %c0_40 = arith.constant 0 : index
    %c0_41 = arith.constant 0 : index
    %198 = vector.load %arg8[%c0_40, %c0_41] : memref<16x128xf32, #tpu.memory_space<vmem>>, vector<16x128xf32>
    tpu.vector_store %arg8[%c0_40, %c0_41], %197 {strides = array<i32>} : memref<16x128xf32, #tpu.memory_space<vmem>>, vector<16x128xf32>,
    return
  }
}

</mosaic_0001>

<llo_original>
// kernel: tpu_custom_call.1
$region0: #{tpu_custom_call.1}
  #allocation0 [shape = 'u32[]', space=smem, size = 0x4, offset = 0x4, fixed_abs, tag = 'smem constant byte address 0x4 - core index']
  #allocation1 [shape = 'u32[144,128]{1,0:T(1,128)}', space=vmem, size = 0x12000, scoped, tag = 'internal scratch']
  %s0 = inlined_call_operand.hbm [shape: f32[16,48], index: 0, kind: input, shape index: {}]
  %s1 = inlined_call_operand.vmem [shape: f32[2,32], index: 1, kind: input, shape index: {}]
  %s2 = inlined_call_operand.vmem [shape: f32[2,32], index: 2, kind: input, shape index: {}]
  %s3 = inlined_call_operand.hbm [shape: f32[48,128], index: 3, kind: input, shape index: {}]
  %s4 = inlined_call_operand.hbm [shape: f32[32,128], index: 4, kind: input, shape index: {}]
  %s5 = inlined_call_operand.vmem [shape: f32[1,128], index: 5, kind: input, shape index: {}]
  %s6 = inlined_call_operand.hbm [shape: f32[32,128], index: 6, kind: input, shape index: {}]
  %s7 = inlined_call_operand.vmem [shape: f32[1,128], index: 7, kind: input, shape index: {}]
  %s8 = inlined_call_operand.hbm [shape: f32[16,128], index: 8, kind: output, shape index: {0}]
  %s9 = inlined_call_operand.hbm [shape: f32[2,32], index: 9, kind: output, shape index: {1}]
  %s10 = inlined_call_operand.hbm [shape: f32[2,32], index: 10, kind: output, shape index: {2}]
  %11 = xla_tuple %s8, %s9, %s10
  %s12 = sld [smem:[#allocation0]]
  $region74: #{tpu_custom_call.1} parent=0
    _
  %s14 = ssub.s32 1, %s12
  %s15 = scalar_select 0, %s14, %s12
  $region1: #{tpu_custom_call.1} parent=0
    #allocation2 [shape = 'u8[8192]{0}', space=vmem, size = 0x2000, scoped, tag = 'input window, operand 0, single buffered']
    #allocation3 [shape = 's32[1]{0}', space=sflag, size = 0x4, scoped, tag = 'scoped memory for tpu_custom_call.1']
    #allocation4 [shape = 's32[1]{0}', space=sflag, size = 0x4, scoped, tag = 'scoped memory for tpu_custom_call.1']
    #allocation5 [shape = 'u8[24576]{0}', space=vmem, size = 0x6000, scoped, tag = 'input window, operand 3, single buffered']
    #allocation6 [shape = 's32[1]{0}', space=sflag, size = 0x4, scoped, tag = 'scoped memory for tpu_custom_call.1']
    #allocation7 [shape = 'u8[16384]{0}', space=vmem, size = 0x4000, scoped, tag = 'input window, operand 4, single buffered']
    #allocation8 [shape = 'u8[16384]{0}', space=vmem, size = 0x4000, scoped, tag = 'input window, operand 6, single buffered']
    #allocation9 [shape = 's32[1]{0}', space=sflag, size = 0x4, scoped, tag = 'scoped memory for tpu_custom_call.1']
    #allocation10 [shape = 'u8[8192]{0}', space=vmem, size = 0x2000, scoped, tag = 'output window, operand 0, single buffered']
    #allocation11 [shape = 'u8[1024]{0}', space=vmem, size = 0x400, scoped, tag = 'output window, operand 1, single buffered']
    #allocation12 [shape = 's32[1]{0}', space=sflag, size = 0x4, scoped, tag = 'scoped memory for tpu_custom_call.1']
    #allocation13 [shape = 'u8[1024]{0}', space=vmem, size = 0x400, scoped, tag = 'output window, operand 2, single buffered']
    %16 = vsyncpa [#allocation3], 0
    %17 = vsyncpa [#allocation6], 0
    %18 = vsyncpa [#allocation9], 0
    %19 = vsyncpa [#allocation4], 0
    %20 = vsyncpa [#allocation12], 0
    // Predicated region
    $region2: #{tpu_custom_call.1} parent=1 // pred_check
      _
    $region3: #{tpu_custom_call.1} parent=1 // pred_check_branch
      %22 = sbr.rel (0) target = $region5
    $region4: #{tpu_custom_call.1} parent=1 // pred_region
      %s24 = ssub.s32 256, 256
      %25 = vsyncadd [#allocation3], %s24
      %s26 = sshll.u32 [#allocation2], 4
      %s27 = int_to_ptr.vmem [resolvable:$true] %s26
      %32 = dma.hbm_to_vmem [thread:$0]  %s0, 256, %s27, [#allocation3], 128, 128, 8
    $region5: #{tpu_custom_call.1} parent=1 // pred_fallthru
      _
    // Predicated region
    $region6: #{tpu_custom_call.1} parent=1 // pred_check
      _
    $region7: #{tpu_custom_call.1} parent=1 // pred_check_branch
      %34 = sbr.rel (0) target = $region9
    $region8: #{tpu_custom_call.1} parent=1 // pred_region
      _
    $region9: #{tpu_custom_call.1} parent=1 // pred_fallthru
      _
    // Predicated region
    $region10: #{tpu_custom_call.1} parent=1 // pred_check
      _
    $region11: #{tpu_custom_call.1} parent=1 // pred_check_branch
      %36 = sbr.rel (0) target = $region13
    $region12: #{tpu_custom_call.1} parent=1 // pred_region
      _
    $region13: #{tpu_custom_call.1} parent=1 // pred_fallthru
      _
    // Predicated region
    $region14: #{tpu_custom_call.1} parent=1 // pred_check
      _
    $region15: #{tpu_custom_call.1} parent=1 // pred_check_branch
      %38 = sbr.rel (0) target = $region17
    $region16: #{tpu_custom_call.1} parent=1 // pred_region
      %s40 = ssub.s32 768, 768
      %41 = vsyncadd [#allocation6], %s40
      %s42 = sshll.u32 [#allocation5], 4
      %s43 = int_to_ptr.vmem [resolvable:$true] %s42
      %48 = dma.hbm_to_vmem [thread:$0]  %s3, 768, %s43, [#allocation6], 128, 128, 8
    $region17: #{tpu_custom_call.1} parent=1 // pred_fallthru
      _
    // Predicated region
    $region18: #{tpu_custom_call.1} parent=1 // pred_check
      _
    $region19: #{tpu_custom_call.1} parent=1 // pred_check_branch
      %50 = sbr.rel (0) target = $region21
    $region20: #{tpu_custom_call.1} parent=1 // pred_region
      %s52 = ssub.s32 512, 512
      %53 = vsyncadd [#allocation6], %s52
      %s54 = sshll.u32 [#allocation7], 4
      %s55 = int_to_ptr.vmem [resolvable:$true] %s54
      %60 = dma.hbm_to_vmem [thread:$0]  %s4, 512, %s55, [#allocation6], 128, 128, 8
    $region21: #{tpu_custom_call.1} parent=1 // pred_fallthru
      _
    // Predicated region
    $region22: #{tpu_custom_call.1} parent=1 // pred_check
      _
    $region23: #{tpu_custom_call.1} parent=1 // pred_check_branch
      %62 = sbr.rel (0) target = $region25
    $region24: #{tpu_custom_call.1} parent=1 // pred_region
      _
    $region25: #{tpu_custom_call.1} parent=1 // pred_fallthru
      _
    // Predicated region
    $region26: #{tpu_custom_call.1} parent=1 // pred_check
      _
    $region27: #{tpu_custom_call.1} parent=1 // pred_check_branch
      %64 = sbr.rel (0) target = $region29
    $region28: #{tpu_custom_call.1} parent=1 // pred_region
      %s66 = ssub.s32 512, 512
      %67 = vsyncadd [#allocation9], %s66
      %s68 = sshll.u32 [#allocation8], 4
      %s69 = int_to_ptr.vmem [resolvable:$true] %s68
      %74 = dma.hbm_to_vmem [thread:$0]  %s6, 512, %s69, [#allocation9], 128, 128, 8
    $region29: #{tpu_custom_call.1} parent=1 // pred_fallthru
      _
    // Predicated region
    $region30: #{tpu_custom_call.1} parent=1 // pred_check
      _
    $region31: #{tpu_custom_call.1} parent=1 // pred_check_branch
      %76 = sbr.rel (0) target = $region33
    $region32: #{tpu_custom_call.1} parent=1 // pred_region
      _
    $region33: #{tpu_custom_call.1} parent=1 // pred_fallthru
      _
    // Predicated region
    $region34: #{tpu_custom_call.1} parent=1 // pred_check
      _
    $region35: #{tpu_custom_call.1} parent=1 // pred_check_branch
      %78 = sbr.rel (0) target = $region37
    $region36: #{tpu_custom_call.1} parent=1 // pred_region
      %79 = dma.done [#allocation3], 256
    $region37: #{tpu_custom_call.1} parent=1 // pred_fallthru
      _
    // Predicated region
    $region38: #{tpu_custom_call.1} parent=1 // pred_check
      _
    $region39: #{tpu_custom_call.1} parent=1 // pred_check_branch
      %81 = sbr.rel (0) target = $region41
    $region40: #{tpu_custom_call.1} parent=1 // pred_region
      %82 = dma.done [#allocation6], 768
    $region41: #{tpu_custom_call.1} parent=1 // pred_fallthru
      _
    // Predicated region
    $region42: #{tpu_custom_call.1} parent=1 // pred_check
      _
    $region43: #{tpu_custom_call.1} parent=1 // pred_check_branch
      %84 = sbr.rel (0) target = $region45
    $region44: #{tpu_custom_call.1} parent=1 // pred_region
      %85 = dma.done [#allocation6], 512
    $region45: #{tpu_custom_call.1} parent=1 // pred_fallthru
      _
    // Predicated region
    $region46: #{tpu_custom_call.1} parent=1 // pred_check
      _
    $region47: #{tpu_custom_call.1} parent=1 // pred_check_branch
      %87 = sbr.rel (0) target = $region49
    $region48: #{tpu_custom_call.1} parent=1 // pred_region
      %88 = dma.done [#allocation9], 512
    $region49: #{tpu_custom_call.1} parent=1 // pred_fallthru
      _
    %v89 = vld [vmem:[#allocation2] sm:$0xff]
    %v90 = vld [vmem:[#allocation2 + $0x8] sm:$0xff]
    %v91 = vld [vmem:[#allocation5] sm:$0xff]
    %v92 = vld [vmem:[#allocation5 + $0x8] sm:$0xff]
    %v93 = vld [vmem:[#allocation5 + $0x10] sm:$0xff]
    %v94 = vld [vmem:[#allocation5 + $0x18] sm:$0xff]
    %v95 = vld [vmem:[#allocation5 + $0x20] sm:$0xff]
    %v96 = vld [vmem:[#allocation5 + $0x28] sm:$0xff]
    %v97 = vld [vmem:[%s5] sm:$0x1]
    %v99 = vlaneseq
    %v100 = vshrl.u32 %v99, 7
    %v101 = vsub.s32 0, %v100
    %v102 = vrot.slane %v97, %v101
    %vm104 = vcmask 392192
    %v106 = vsel %vm104, %v89, 0
    %v109 = vsel %vm104, %v90, 0
    %111 = vmatprep.subr.mxu0 0.0
    %112 = vmatpush1.msra.mxu0 %v91
    %113 = vmatprep.subr.mxu0 0.0
    %114 = vmatpush1.msra.mxu0 %v92
    %115 = vmatprep.subr.mxu0 0.0
    %116 = vmatpush1.msra.mxu0 %v93
    %117 = vmatprep.subr.mxu0 0.0
    %118 = vmatpush1.msra.mxu0 %v94
    %119 = vmatprep.subr.mxu0 0.0
    %120 = vmatpush1.msra.mxu0 %v95
    %121 = vmatprep.subr.mxu0 0.0
    %122 = vmatpush1.msra.mxu0 %v96
    %123 = vmatprep.subr.mxu0 0.0
    %124 = vmatpush1.msra.mxu0 0.0
    %125 = vmatprep.subr.mxu0 0.0
    %126 = vmatpush1.msra.mxu0 0.0
    %127 = vmatprep.subr.mxu0 0.0
    %128 = vmatpush1.msra.mxu0 0.0
    %129 = vmatprep.subr.mxu0 0.0
    %130 = vmatpush1.msra.mxu0 0.0
    %131 = vmatprep.subr.mxu0 0.0
    %132 = vmatpush1.msra.mxu0 0.0
    %133 = vmatprep.subr.mxu0 0.0
    %134 = vmatpush1.msra.mxu0 0.0
    %135 = vmatprep.subr.mxu0 0.0
    %136 = vmatpush1.msra.mxu0 0.0
    %137 = vmatprep.subr.mxu0 0.0
    %138 = vmatpush1.msra.mxu0 0.0
    %139 = vmatprep.subr.mxu0 0.0
    %140 = vmatpush1.msra.mxu0 0.0
    %141 = vmatprep.subr.mxu0 0.0
    %142 = vmatpush1.msra.mxu0 0.0
    %143 = vmatprep.subr.mxu0 0.0
    %144 = vmatpush1.msra.mxu0 0.0
    %145 = vmatprep.subr.mxu0 0.0
    %146 = vmatpush1.msra.mxu0 0.0
    %147 = vmatprep.subr.mxu0 0.0
    %148 = vmatpush1.msra.mxu0 0.0
    %149 = vmatprep.subr.mxu0 0.0
    %150 = vmatpush1.msra.mxu0 0.0
    %151 = vmatprep.subr.mxu0 0.0
    %152 = vmatpush1.msra.mxu0 0.0
    %153 = vmatprep.subr.mxu0 0.0
    %154 = vmatpush1.msra.mxu0 0.0
    %155 = vmatprep.subr.mxu0 0.0
    %156 = vmatpush1.msra.mxu0 0.0
    %157 = vmatprep.subr.mxu0 0.0
    %158 = vmatpush1.msra.mxu0 0.0
    %159 = vmatprep.subr.mxu0 0.0
    %160 = vmatpush1.msra.mxu0 0.0
    %161 = vmatprep.subr.mxu0 0.0
    %162 = vmatpush1.msra.mxu0 0.0
    %163 = vmatprep.subr.mxu0 0.0
    %164 = vmatpush1.msra.mxu0 0.0
    %165 = vmatprep.subr.mxu0 0.0
    %166 = vmatpush1.msra.mxu0 0.0
    %167 = vmatprep.subr.mxu0 0.0
    %168 = vmatpush1.msra.mxu0 0.0
    %169 = vmatprep.subr.mxu0 0.0
    %170 = vmatpush1.msra.mxu0 0.0
    %171 = vmatprep.subr.mxu0 0.0
    %172 = vmatpush1.msra.mxu0 0.0
    %173 = vmatprep.subr.mxu0 0.0
    %174 = vmatpush1.msra.mxu0 0.0
    %175 = vmatprep.mubr.f32.mxu0 0.0
    %176 = vmatmul.mubr.f32.gmra.mrb[0].mxu0 %v106
    %v177 = vpop.f32.mrb[0].mxu0
    %v178 = vadd.f32 %v102, %v177
    %v179 = vpop.f32.mrb[0].mxu0
    %180 = vmatprep.mubr.f32.mxu0 0.0
    %181 = vmatmul.mubr.f32.gmra.mrb[0].mxu0 %v109
    %v182 = vpop.f32.mrb[0].mxu0
    %v183 = vadd.f32 %v102, %v182
    %v184 = vpop.f32.mrb[0].mxu0
    %185 = vdwg.mxu0
    %v188 = vcombine.high %v178, %v178
    %v190 = vunpack.c.l.s4 1983009808
    %v191 = vunpack.c.0.s8 %v190
    %v192 = vlaneseq
    %v193 = vshrl.u32 %v192, 7
    %v194 = vsub.s32 %v191, %v193
    %v195 = vrot.slane %v178, %v194
    %v197 = vunpack.c.l.s4 1983009808
    %v198 = vunpack.c.0.s8 %v197
    %v199 = vlaneseq
    %v200 = vshrl.u32 %v199, 7
    %v201 = vsub.s32 %v198, %v200
    %v202 = vrot.slane %v188, %v201
    %v203 = vcombine.high %v195, %v195
    %v204 = vcombine.high %v202, %v202
    %v205 = vcombine.high %v183, %v183
    %v207 = vunpack.c.l.s4 1983009808
    %v208 = vunpack.c.0.s8 %v207
    %v209 = vlaneseq
    %v210 = vshrl.u32 %v209, 7
    %v211 = vsub.s32 %v208, %v210
    %v212 = vrot.slane %v183, %v211
    %v214 = vunpack.c.l.s4 1983009808
    %v215 = vunpack.c.0.s8 %v214
    %v216 = vlaneseq
    %v217 = vshrl.u32 %v216, 7
    %v218 = vsub.s32 %v215, %v217
    %v219 = vrot.slane %v205, %v218
    %v220 = vcombine.high %v212, %v212
    %v221 = vcombine.high %v219, %v219
    %v230 = vlaneseq
    %v231 = vand.u32 %v230, 127
    %vm232 = vcmp.ge.s32.totalorder %v231, 64
    %vm233 = vcmp.lt.s32.totalorder %v231, 96
    %vm234 = vmand %vm232, %vm233
    %v235 = vsel %vm234, 2.0, 1.0
    %v236 = vsel %vm234, -1.0, 0.0
    %v237 = vld [vmem:[%s1] sm:$0x3]
    %v238 = vld [vmem:[%s2] sm:$0x3]
    %v239 = vld [vmem:[#allocation7] sm:$0xff]
    %v240 = vld [vmem:[#allocation7 + $0x8] sm:$0xff]
    %v241 = vld [vmem:[#allocation7 + $0x10] sm:$0xff]
    %v242 = vld [vmem:[#allocation7 + $0x18] sm:$0xff]
    %vm243 = vcmask 261120
    %v245 = vsel %vm243, %v237, 0
    %247 = vmatprep.subr.mxu0 0.0
    %248 = vmatpush1.msra.mxu0 %v239
    %249 = vmatprep.subr.mxu0 0.0
    %250 = vmatpush1.msra.mxu0 %v240
    %251 = vmatprep.subr.mxu0 0.0
    %252 = vmatpush1.msra.mxu0 %v241
    %253 = vmatprep.subr.mxu0 0.0
    %254 = vmatpush1.msra.mxu0 %v242
    %255 = vmatprep.subr.mxu0 0.0
    %256 = vmatpush1.msra.mxu0 0.0
    %257 = vmatprep.subr.mxu0 0.0
    %258 = vmatpush1.msra.mxu0 0.0
    %259 = vmatprep.subr.mxu0 0.0
    %260 = vmatpush1.msra.mxu0 0.0
    %261 = vmatprep.subr.mxu0 0.0
    %262 = vmatpush1.msra.mxu0 0.0
    %263 = vmatprep.subr.mxu0 0.0
    %264 = vmatpush1.msra.mxu0 0.0
    %265 = vmatprep.subr.mxu0 0.0
    %266 = vmatpush1.msra.mxu0 0.0
    %267 = vmatprep.subr.mxu0 0.0
    %268 = vmatpush1.msra.mxu0 0.0
    %269 = vmatprep.subr.mxu0 0.0
    %270 = vmatpush1.msra.mxu0 0.0
    %271 = vmatprep.subr.mxu0 0.0
    %272 = vmatpush1.msra.mxu0 0.0
    %273 = vmatprep.subr.mxu0 0.0
    %274 = vmatpush1.msra.mxu0 0.0
    %275 = vmatprep.subr.mxu0 0.0
    %276 = vmatpush1.msra.mxu0 0.0
    %277 = vmatprep.subr.mxu0 0.0
    %278 = vmatpush1.msra.mxu0 0.0
    %279 = vmatprep.subr.mxu0 0.0
    %280 = vmatpush1.msra.mxu0 0.0
    %281 = vmatprep.subr.mxu0 0.0
    %282 = vmatpush1.msra.mxu0 0.0
    %283 = vmatprep.subr.mxu0 0.0
    %284 = vmatpush1.msra.mxu0 0.0
    %285 = vmatprep.subr.mxu0 0.0
    %286 = vmatpush1.msra.mxu0 0.0
    %287 = vmatprep.subr.mxu0 0.0
    %288 = vmatpush1.msra.mxu0 0.0
    %289 = vmatprep.subr.mxu0 0.0
    %290 = vmatpush1.msra.mxu0 0.0
    %291 = vmatprep.subr.mxu0 0.0
    %292 = vmatpush1.msra.mxu0 0.0
    %293 = vmatprep.subr.mxu0 0.0
    %294 = vmatpush1.msra.mxu0 0.0
    %295 = vmatprep.subr.mxu0 0.0
    %296 = vmatpush1.msra.mxu0 0.0
    %297 = vmatprep.subr.mxu0 0.0
    %298 = vmatpush1.msra.mxu0 0.0
    %299 = vmatprep.subr.mxu0 0.0
    %300 = vmatpush1.msra.mxu0 0.0
    %301 = vmatprep.subr.mxu0 0.0
    %302 = vmatpush1.msra.mxu0 0.0
    %303 = vmatprep.subr.mxu0 0.0
    %304 = vmatpush1.msra.mxu0 0.0
    %305 = vmatprep.subr.mxu0 0.0
    %306 = vmatpush1.msra.mxu0 0.0
    %307 = vmatprep.subr.mxu0 0.0
    %308 = vmatpush1.msra.mxu0 0.0
    %309 = vmatprep.subr.mxu0 0.0
    %310 = vmatpush1.msra.mxu0 0.0
    %311 = vmatprep.mubr.f32.mxu0 0.0
    %312 = vmatmul.mubr.f32.gmra.mrb[0].mxu0 %v245
    %v313 = vpop.f32.mrb[0].mxu0
    %v314 = vadd.f32 0.0, %v313
    %v315 = vpop.f32.mrb[0].mxu0
    %316 = vdwg.mxu0
    %v317 = vadd.f32 %v195, %v314
    %v318 = vmul.f32 %v317, %v235
    %v319 = vxor.u32 %v318, 2147483648
    %v320 = vmul.f32 %v319, 1.442695
    %v321 = vpow.pop %v320
    %v322 = vadd.f32 %v321, 1.0
    %v323 = vrcp.pop %v322
    %v324 = vmul.f32 1.0, %v323
    %v325 = vmul.f32 %v324, %v235
    %v326 = vadd.f32 %v325, %v236
    %v329 = vunpack.c.l.s4 1983009808
    %v330 = vunpack.c.0.s8 %v329
    %v331 = vlaneseq
    %v332 = vshrl.u32 %v331, 7
    %v333 = vsub.s32 %v330, %v332
    %v334 = vrot.slane %v238, %v333
    %335 = vrot.lane.b32.xlu0 %v334, 32
    %v336 = vpop.permute.xlu0 %335
    %v338 = vmul.f32 %v326, %v336
    %340 = vrot.lane.b32.xlu0 %v326, 64
    %v341 = vpop.permute.xlu0 %340
    %v343 = vmul.f32 %v326, %v341
    %345 = vrot.lane.b32.xlu0 %v343, 32
    %v346 = vpop.permute.xlu0 %345
    %v348 = vadd.f32 %v338, %v346
    %v349 = vtanh.pop %v348
    %351 = vrot.lane.b32.xlu0 %v349, 64
    %v352 = vpop.permute.xlu0 %351
    %v354 = vmul.f32 %v326, %v352
    %v357 = vunpack.c.l.s4 1983009808
    %v358 = vunpack.c.0.s8 %v357
    %v359 = vlaneseq
    %v360 = vshrl.u32 %v359, 7
    %v361 = vsub.s32 %v358, %v360
    %v362 = vrot.slane %v354, %v361
    %363 = vrot.lane.b32.xlu0 %v362, 32
    %v364 = vpop.permute.xlu0 %363
    %v365 = vsel %vm243, %v364, 0
    %367 = vmatprep.subr.mxu0 0.0
    %368 = vmatpush1.msra.mxu0 %v239
    %369 = vmatprep.subr.mxu0 0.0
    %370 = vmatpush1.msra.mxu0 %v240
    %371 = vmatprep.subr.mxu0 0.0
    %372 = vmatpush1.msra.mxu0 %v241
    %373 = vmatprep.subr.mxu0 0.0
    %374 = vmatpush1.msra.mxu0 %v242
    %375 = vmatprep.subr.mxu0 0.0
    %376 = vmatpush1.msra.mxu0 0.0
    %377 = vmatprep.subr.mxu0 0.0
    %378 = vmatpush1.msra.mxu0 0.0
    %379 = vmatprep.subr.mxu0 0.0
    %380 = vmatpush1.msra.mxu0 0.0
    %381 = vmatprep.subr.mxu0 0.0
    %382 = vmatpush1.msra.mxu0 0.0
    %383 = vmatprep.subr.mxu0 0.0
    %384 = vmatpush1.msra.mxu0 0.0
    %385 = vmatprep.subr.mxu0 0.0
    %386 = vmatpush1.msra.mxu0 0.0
    %387 = vmatprep.subr.mxu0 0.0
    %388 = vmatpush1.msra.mxu0 0.0
    %389 = vmatprep.subr.mxu0 0.0
    %390 = vmatpush1.msra.mxu0 0.0
    %391 = vmatprep.subr.mxu0 0.0
    %392 = vmatpush1.msra.mxu0 0.0
    %393 = vmatprep.subr.mxu0 0.0
    %394 = vmatpush1.msra.mxu0 0.0
    %395 = vmatprep.subr.mxu0 0.0
    %396 = vmatpush1.msra.mxu0 0.0
    %397 = vmatprep.subr.mxu0 0.0
    %398 = vmatpush1.msra.mxu0 0.0
    %399 = vmatprep.subr.mxu0 0.0
    %400 = vmatpush1.msra.mxu0 0.0
    %401 = vmatprep.subr.mxu0 0.0
    %402 = vmatpush1.msra.mxu0 0.0
    %403 = vmatprep.subr.mxu0 0.0
    %404 = vmatpush1.msra.mxu0 0.0
    %405 = vmatprep.subr.mxu0 0.0
    %406 = vmatpush1.msra.mxu0 0.0
    %407 = vmatprep.subr.mxu0 0.0
    %408 = vmatpush1.msra.mxu0 0.0
    %409 = vmatprep.subr.mxu0 0.0
    %410 = vmatpush1.msra.mxu0 0.0
    %411 = vmatprep.subr.mxu0 0.0
    %412 = vmatpush1.msra.mxu0 0.0
    %413 = vmatprep.subr.mxu0 0.0
    %414 = vmatpush1.msra.mxu0 0.0
    %415 = vmatprep.subr.mxu0 0.0
    %416 = vmatpush1.msra.mxu0 0.0
    %417 = vmatprep.subr.mxu0 0.0
    %418 = vmatpush1.msra.mxu0 0.0
    %419 = vmatprep.subr.mxu0 0.0
    %420 = vmatpush1.msra.mxu0 0.0
    %421 = vmatprep.subr.mxu0 0.0
    %422 = vmatpush1.msra.mxu0 0.0
    %423 = vmatprep.subr.mxu0 0.0
    %424 = vmatpush1.msra.mxu0 0.0
    %425 = vmatprep.subr.mxu0 0.0
    %426 = vmatpush1.msra.mxu0 0.0
    %427 = vmatprep.subr.mxu0 0.0
    %428 = vmatpush1.msra.mxu0 0.0
    %429 = vmatprep.subr.mxu0 0.0
    %430 = vmatpush1.msra.mxu0 0.0
    %431 = vmatprep.mubr.f32.mxu0 0.0
    %432 = vmatmul.mubr.f32.gmra.mrb[0].mxu0 %v365
    %v433 = vpop.f32.mrb[0].mxu0
    %v434 = vadd.f32 0.0, %v433
    %v435 = vpop.f32.mrb[0].mxu0
    %436 = vdwg.mxu0
    %v437 = vadd.f32 %v203, %v434
    %v438 = vmul.f32 %v437, %v235
    %v439 = vxor.u32 %v438, 2147483648
    %v440 = vmul.f32 %v439, 1.442695
    %v441 = vpow.pop %v440
    %v442 = vadd.f32 %v441, 1.0
    %v443 = vrcp.pop %v442
    %v444 = vmul.f32 1.0, %v443
    %v445 = vmul.f32 %v444, %v235
    %v446 = vadd.f32 %v445, %v236
    %v447 = vmul.f32 %v446, %v348
    %449 = vrot.lane.b32.xlu0 %v446, 64
    %v450 = vpop.permute.xlu0 %449
    %v452 = vmul.f32 %v446, %v450
    %454 = vrot.lane.b32.xlu0 %v452, 32
    %v455 = vpop.permute.xlu0 %454
    %v457 = vadd.f32 %v447, %v455
    %v458 = vtanh.pop %v457
    %460 = vrot.lane.b32.xlu0 %v458, 64
    %v461 = vpop.permute.xlu0 %460
    %v463 = vmul.f32 %v446, %v461
    %v466 = vunpack.c.l.s4 1983009808
    %v467 = vunpack.c.0.s8 %v466
    %v468 = vlaneseq
    %v469 = vshrl.u32 %v468, 7
    %v470 = vsub.s32 %v467, %v469
    %v471 = vrot.slane %v463, %v470
    %472 = vrot.lane.b32.xlu0 %v471, 32
    %v473 = vpop.permute.xlu0 %472
    %v474 = vsel %vm243, %v473, 0
    %476 = vmatprep.subr.mxu0 0.0
    %477 = vmatpush1.msra.mxu0 %v239
    %478 = vmatprep.subr.mxu0 0.0
    %479 = vmatpush1.msra.mxu0 %v240
    %480 = vmatprep.subr.mxu0 0.0
    %481 = vmatpush1.msra.mxu0 %v241
    %482 = vmatprep.subr.mxu0 0.0
    %483 = vmatpush1.msra.mxu0 %v242
    %484 = vmatprep.subr.mxu0 0.0
    %485 = vmatpush1.msra.mxu0 0.0
    %486 = vmatprep.subr.mxu0 0.0
    %487 = vmatpush1.msra.mxu0 0.0
    %488 = vmatprep.subr.mxu0 0.0
    %489 = vmatpush1.msra.mxu0 0.0
    %490 = vmatprep.subr.mxu0 0.0
    %491 = vmatpush1.msra.mxu0 0.0
    %492 = vmatprep.subr.mxu0 0.0
    %493 = vmatpush1.msra.mxu0 0.0
    %494 = vmatprep.subr.mxu0 0.0
    %495 = vmatpush1.msra.mxu0 0.0
    %496 = vmatprep.subr.mxu0 0.0
    %497 = vmatpush1.msra.mxu0 0.0
    %498 = vmatprep.subr.mxu0 0.0
    %499 = vmatpush1.msra.mxu0 0.0
    %500 = vmatprep.subr.mxu0 0.0
    %501 = vmatpush1.msra.mxu0 0.0
    %502 = vmatprep.subr.mxu0 0.0
    %503 = vmatpush1.msra.mxu0 0.0
    %504 = vmatprep.subr.mxu0 0.0
    %505 = vmatpush1.msra.mxu0 0.0
    %506 = vmatprep.subr.mxu0 0.0
    %507 = vmatpush1.msra.mxu0 0.0
    %508 = vmatprep.subr.mxu0 0.0
    %509 = vmatpush1.msra.mxu0 0.0
    %510 = vmatprep.subr.mxu0 0.0
    %511 = vmatpush1.msra.mxu0 0.0
    %512 = vmatprep.subr.mxu0 0.0
    %513 = vmatpush1.msra.mxu0 0.0
    %514 = vmatprep.subr.mxu0 0.0
    %515 = vmatpush1.msra.mxu0 0.0
    %516 = vmatprep.subr.mxu0 0.0
    %517 = vmatpush1.msra.mxu0 0.0
    %518 = vmatprep.subr.mxu0 0.0
    %519 = vmatpush1.msra.mxu0 0.0
    %520 = vmatprep.subr.mxu0 0.0
    %521 = vmatpush1.msra.mxu0 0.0
    %522 = vmatprep.subr.mxu0 0.0
    %523 = vmatpush1.msra.mxu0 0.0
    %524 = vmatprep.subr.mxu0 0.0
    %525 = vmatpush1.msra.mxu0 0.0
    %526 = vmatprep.subr.mxu0 0.0
    %527 = vmatpush1.msra.mxu0 0.0
    %528 = vmatprep.subr.mxu0 0.0
    %529 = vmatpush1.msra.mxu0 0.0
    %530 = vmatprep.subr.mxu0 0.0
    %531 = vmatpush1.msra.mxu0 0.0
    %532 = vmatprep.subr.mxu0 0.0
    %533 = vmatpush1.msra.mxu0 0.0
    %534 = vmatprep.subr.mxu0 0.0
    %535 = vmatpush1.msra.mxu0 0.0
    %536 = vmatprep.subr.mxu0 0.0
    %537 = vmatpush1.msra.mxu0 0.0
    %538 = vmatprep.subr.mxu0 0.0
    %539 = vmatpush1.msra.mxu0 0.0
    %540 = vmatprep.mubr.f32.mxu0 0.0
    %541 = vmatmul.mubr.f32.gmra.mrb[0].mxu0 %v474
    %v542 = vpop.f32.mrb[0].mxu0
    %v543 = vadd.f32 0.0, %v542
    %v544 = vpop.f32.mrb[0].mxu0
    %545 = vdwg.mxu0
    %v546 = vadd.f32 %v202, %v543
    %v547 = vmul.f32 %v546, %v235
    %v548 = vxor.u32 %v547, 2147483648
    %v549 = vmul.f32 %v548, 1.442695
    %v550 = vpow.pop %v549
    %v551 = vadd.f32 %v550, 1.0
    %v552 = vrcp.pop %v551
    %v553 = vmul.f32 1.0, %v552
    %v554 = vmul.f32 %v553, %v235
    %v555 = vadd.f32 %v554, %v236
    %v556 = vmul.f32 %v555, %v457
    %558 = vrot.lane.b32.xlu0 %v555, 64
    %v559 = vpop.permute.xlu0 %558
    %v561 = vmul.f32 %v555, %v559
    %563 = vrot.lane.b32.xlu0 %v561, 32
    %v564 = vpop.permute.xlu0 %563
    %v566 = vadd.f32 %v556, %v564
    %v567 = vtanh.pop %v566
    %569 = vrot.lane.b32.xlu0 %v567, 64
    %v570 = vpop.permute.xlu0 %569
    %v572 = vmul.f32 %v555, %v570
    %v575 = vunpack.c.l.s4 1983009808
    %v576 = vunpack.c.0.s8 %v575
    %v577 = vlaneseq
    %v578 = vshrl.u32 %v577, 7
    %v579 = vsub.s32 %v576, %v578
    %v580 = vrot.slane %v572, %v579
    %581 = vrot.lane.b32.xlu0 %v580, 32
    %v582 = vpop.permute.xlu0 %581
    %v583 = vsel %vm243, %v582, 0
    %585 = vmatprep.subr.mxu0 0.0
    %586 = vmatpush1.msra.mxu0 %v239
    %587 = vmatprep.subr.mxu0 0.0
    %588 = vmatpush1.msra.mxu0 %v240
    %589 = vmatprep.subr.mxu0 0.0
    %590 = vmatpush1.msra.mxu0 %v241
    %591 = vmatprep.subr.mxu0 0.0
    %592 = vmatpush1.msra.mxu0 %v242
    %593 = vmatprep.subr.mxu0 0.0
    %594 = vmatpush1.msra.mxu0 0.0
    %595 = vmatprep.subr.mxu0 0.0
    %596 = vmatpush1.msra.mxu0 0.0
    %597 = vmatprep.subr.mxu0 0.0
    %598 = vmatpush1.msra.mxu0 0.0
    %599 = vmatprep.subr.mxu0 0.0
    %600 = vmatpush1.msra.mxu0 0.0
    %601 = vmatprep.subr.mxu0 0.0
    %602 = vmatpush1.msra.mxu0 0.0
    %603 = vmatprep.subr.mxu0 0.0
    %604 = vmatpush1.msra.mxu0 0.0
    %605 = vmatprep.subr.mxu0 0.0
    %606 = vmatpush1.msra.mxu0 0.0
    %607 = vmatprep.subr.mxu0 0.0
    %608 = vmatpush1.msra.mxu0 0.0
    %609 = vmatprep.subr.mxu0 0.0
    %610 = vmatpush1.msra.mxu0 0.0
    %611 = vmatprep.subr.mxu0 0.0
    %612 = vmatpush1.msra.mxu0 0.0
    %613 = vmatprep.subr.mxu0 0.0
    %614 = vmatpush1.msra.mxu0 0.0
    %615 = vmatprep.subr.mxu0 0.0
    %616 = vmatpush1.msra.mxu0 0.0
    %617 = vmatprep.subr.mxu0 0.0
    %618 = vmatpush1.msra.mxu0 0.0
    %619 = vmatprep.subr.mxu0 0.0
    %620 = vmatpush1.msra.mxu0 0.0
    %621 = vmatprep.subr.mxu0 0.0
    %622 = vmatpush1.msra.mxu0 0.0
    %623 = vmatprep.subr.mxu0 0.0
    %624 = vmatpush1.msra.mxu0 0.0
    %625 = vmatprep.subr.mxu0 0.0
    %626 = vmatpush1.msra.mxu0 0.0
    %627 = vmatprep.subr.mxu0 0.0
    %628 = vmatpush1.msra.mxu0 0.0
    %629 = vmatprep.subr.mxu0 0.0
    %630 = vmatpush1.msra.mxu0 0.0
    %631 = vmatprep.subr.mxu0 0.0
    %632 = vmatpush1.msra.mxu0 0.0
    %633 = vmatprep.subr.mxu0 0.0
    %634 = vmatpush1.msra.mxu0 0.0
    %635 = vmatprep.subr.mxu0 0.0
    %636 = vmatpush1.msra.mxu0 0.0
    %637 = vmatprep.subr.mxu0 0.0
    %638 = vmatpush1.msra.mxu0 0.0
    %639 = vmatprep.subr.mxu0 0.0
    %640 = vmatpush1.msra.mxu0 0.0
    %641 = vmatprep.subr.mxu0 0.0
    %642 = vmatpush1.msra.mxu0 0.0
    %643 = vmatprep.subr.mxu0 0.0
    %644 = vmatpush1.msra.mxu0 0.0
    %645 = vmatprep.subr.mxu0 0.0
    %646 = vmatpush1.msra.mxu0 0.0
    %647 = vmatprep.subr.mxu0 0.0
    %648 = vmatpush1.msra.mxu0 0.0
    %649 = vmatprep.mubr.f32.mxu0 0.0
    %650 = vmatmul.mubr.f32.gmra.mrb[0].mxu0 %v583
    %v651 = vpop.f32.mrb[0].mxu0
    %v652 = vadd.f32 0.0, %v651
    %v653 = vpop.f32.mrb[0].mxu0
    %654 = vdwg.mxu0
    %v655 = vadd.f32 %v204, %v652
    %v656 = vmul.f32 %v655, %v235
    %v657 = vxor.u32 %v656, 2147483648
    %v658 = vmul.f32 %v657, 1.442695
    %v659 = vpow.pop %v658
    %v660 = vadd.f32 %v659, 1.0
    %v661 = vrcp.pop %v660
    %v662 = vmul.f32 1.0, %v661
    %v663 = vmul.f32 %v662, %v235
    %v664 = vadd.f32 %v663, %v236
    %v665 = vmul.f32 %v664, %v566
    %667 = vrot.lane.b32.xlu0 %v664, 64
    %v668 = vpop.permute.xlu0 %667
    %v670 = vmul.f32 %v664, %v668
    %672 = vrot.lane.b32.xlu0 %v670, 32
    %v673 = vpop.permute.xlu0 %672
    %v675 = vadd.f32 %v665, %v673
    %v676 = vtanh.pop %v675
    %678 = vrot.lane.b32.xlu0 %v676, 64
    %v679 = vpop.permute.xlu0 %678
    %v681 = vmul.f32 %v664, %v679
    %v684 = vunpack.c.l.s4 1983009808
    %v685 = vunpack.c.0.s8 %v684
    %v686 = vlaneseq
    %v687 = vshrl.u32 %v686, 7
    %v688 = vsub.s32 %v685, %v687
    %v689 = vrot.slane %v681, %v688
    %690 = vrot.lane.b32.xlu0 %v689, 32
    %v691 = vpop.permute.xlu0 %690
    %v692 = vsel %vm243, %v691, 0
    %694 = vmatprep.subr.mxu0 0.0
    %695 = vmatpush1.msra.mxu0 %v239
    %696 = vmatprep.subr.mxu0 0.0
    %697 = vmatpush1.msra.mxu0 %v240
    %698 = vmatprep.subr.mxu0 0.0
    %699 = vmatpush1.msra.mxu0 %v241
    %700 = vmatprep.subr.mxu0 0.0
    %701 = vmatpush1.msra.mxu0 %v242
    %702 = vmatprep.subr.mxu0 0.0
    %703 = vmatpush1.msra.mxu0 0.0
    %704 = vmatprep.subr.mxu0 0.0
    %705 = vmatpush1.msra.mxu0 0.0
    %706 = vmatprep.subr.mxu0 0.0
    %707 = vmatpush1.msra.mxu0 0.0
    %708 = vmatprep.subr.mxu0 0.0
    %709 = vmatpush1.msra.mxu0 0.0
    %710 = vmatprep.subr.mxu0 0.0
    %711 = vmatpush1.msra.mxu0 0.0
    %712 = vmatprep.subr.mxu0 0.0
    %713 = vmatpush1.msra.mxu0 0.0
    %714 = vmatprep.subr.mxu0 0.0
    %715 = vmatpush1.msra.mxu0 0.0
    %716 = vmatprep.subr.mxu0 0.0
    %717 = vmatpush1.msra.mxu0 0.0
    %718 = vmatprep.subr.mxu0 0.0
    %719 = vmatpush1.msra.mxu0 0.0
    %720 = vmatprep.subr.mxu0 0.0
    %721 = vmatpush1.msra.mxu0 0.0
    %722 = vmatprep.subr.mxu0 0.0
    %723 = vmatpush1.msra.mxu0 0.0
    %724 = vmatprep.subr.mxu0 0.0
    %725 = vmatpush1.msra.mxu0 0.0
    %726 = vmatprep.subr.mxu0 0.0
    %727 = vmatpush1.msra.mxu0 0.0
    %728 = vmatprep.subr.mxu0 0.0
    %729 = vmatpush1.msra.mxu0 0.0
    %730 = vmatprep.subr.mxu0 0.0
    %731 = vmatpush1.msra.mxu0 0.0
    %732 = vmatprep.subr.mxu0 0.0
    %733 = vmatpush1.msra.mxu0 0.0
    %734 = vmatprep.subr.mxu0 0.0
    %735 = vmatpush1.msra.mxu0 0.0
    %736 = vmatprep.subr.mxu0 0.0
    %737 = vmatpush1.msra.mxu0 0.0
    %738 = vmatprep.subr.mxu0 0.0
    %739 = vmatpush1.msra.mxu0 0.0
    %740 = vmatprep.subr.mxu0 0.0
    %741 = vmatpush1.msra.mxu0 0.0
    %742 = vmatprep.subr.mxu0 0.0
    %743 = vmatpush1.msra.mxu0 0.0
    %744 = vmatprep.subr.mxu0 0.0
    %745 = vmatpush1.msra.mxu0 0.0
    %746 = vmatprep.subr.mxu0 0.0
    %747 = vmatpush1.msra.mxu0 0.0
    %748 = vmatprep.subr.mxu0 0.0
    %749 = vmatpush1.msra.mxu0 0.0
    %750 = vmatprep.subr.mxu0 0.0
    %751 = vmatpush1.msra.mxu0 0.0
    %752 = vmatprep.subr.mxu0 0.0
    %753 = vmatpush1.msra.mxu0 0.0
    %754 = vmatprep.subr.mxu0 0.0
    %755 = vmatpush1.msra.mxu0 0.0
    %756 = vmatprep.subr.mxu0 0.0
    %757 = vmatpush1.msra.mxu0 0.0
    %758 = vmatprep.mubr.f32.mxu0 0.0
    %759 = vmatmul.mubr.f32.gmra.mrb[0].mxu0 %v692
    %v760 = vpop.f32.mrb[0].mxu0
    %v761 = vadd.f32 0.0, %v760
    %v762 = vpop.f32.mrb[0].mxu0
    %763 = vdwg.mxu0
    %v764 = vadd.f32 %v212, %v761
    %v765 = vmul.f32 %v764, %v235
    %v766 = vxor.u32 %v765, 2147483648
    %v767 = vmul.f32 %v766, 1.442695
    %v768 = vpow.pop %v767
    %v769 = vadd.f32 %v768, 1.0
    %v770 = vrcp.pop %v769
    %v771 = vmul.f32 1.0, %v770
    %v772 = vmul.f32 %v771, %v235
    %v773 = vadd.f32 %v772, %v236
    %v774 = vmul.f32 %v773, %v675
    %776 = vrot.lane.b32.xlu0 %v773, 64
    %v777 = vpop.permute.xlu0 %776
    %v779 = vmul.f32 %v773, %v777
    %781 = vrot.lane.b32.xlu0 %v779, 32
    %v782 = vpop.permute.xlu0 %781
    %v784 = vadd.f32 %v774, %v782
    %v785 = vtanh.pop %v784
    %787 = vrot.lane.b32.xlu0 %v785, 64
    %v788 = vpop.permute.xlu0 %787
    %v790 = vmul.f32 %v773, %v788
    %v793 = vunpack.c.l.s4 1983009808
    %v794 = vunpack.c.0.s8 %v793
    %v795 = vlaneseq
    %v796 = vshrl.u32 %v795, 7
    %v797 = vsub.s32 %v794, %v796
    %v798 = vrot.slane %v790, %v797
    %799 = vrot.lane.b32.xlu0 %v798, 32
    %v800 = vpop.permute.xlu0 %799
    %v801 = vsel %vm243, %v800, 0
    %803 = vmatprep.subr.mxu0 0.0
    %804 = vmatpush1.msra.mxu0 %v239
    %805 = vmatprep.subr.mxu0 0.0
    %806 = vmatpush1.msra.mxu0 %v240
    %807 = vmatprep.subr.mxu0 0.0
    %808 = vmatpush1.msra.mxu0 %v241
    %809 = vmatprep.subr.mxu0 0.0
    %810 = vmatpush1.msra.mxu0 %v242
    %811 = vmatprep.subr.mxu0 0.0
    %812 = vmatpush1.msra.mxu0 0.0
    %813 = vmatprep.subr.mxu0 0.0
    %814 = vmatpush1.msra.mxu0 0.0
    %815 = vmatprep.subr.mxu0 0.0
    %816 = vmatpush1.msra.mxu0 0.0
    %817 = vmatprep.subr.mxu0 0.0
    %818 = vmatpush1.msra.mxu0 0.0
    %819 = vmatprep.subr.mxu0 0.0
    %820 = vmatpush1.msra.mxu0 0.0
    %821 = vmatprep.subr.mxu0 0.0
    %822 = vmatpush1.msra.mxu0 0.0
    %823 = vmatprep.subr.mxu0 0.0
    %824 = vmatpush1.msra.mxu0 0.0
    %825 = vmatprep.subr.mxu0 0.0
    %826 = vmatpush1.msra.mxu0 0.0
    %827 = vmatprep.subr.mxu0 0.0
    %828 = vmatpush1.msra.mxu0 0.0
    %829 = vmatprep.subr.mxu0 0.0
    %830 = vmatpush1.msra.mxu0 0.0
    %831 = vmatprep.subr.mxu0 0.0
    %832 = vmatpush1.msra.mxu0 0.0
    %833 = vmatprep.subr.mxu0 0.0
    %834 = vmatpush1.msra.mxu0 0.0
    %835 = vmatprep.subr.mxu0 0.0
    %836 = vmatpush1.msra.mxu0 0.0
    %837 = vmatprep.subr.mxu0 0.0
    %838 = vmatpush1.msra.mxu0 0.0
    %839 = vmatprep.subr.mxu0 0.0
    %840 = vmatpush1.msra.mxu0 0.0
    %841 = vmatprep.subr.mxu0 0.0
    %842 = vmatpush1.msra.mxu0 0.0
    %843 = vmatprep.subr.mxu0 0.0
    %844 = vmatpush1.msra.mxu0 0.0
    %845 = vmatprep.subr.mxu0 0.0
    %846 = vmatpush1.msra.mxu0 0.0
    %847 = vmatprep.subr.mxu0 0.0
    %848 = vmatpush1.msra.mxu0 0.0
    %849 = vmatprep.subr.mxu0 0.0
    %850 = vmatpush1.msra.mxu0 0.0
    %851 = vmatprep.subr.mxu0 0.0
    %852 = vmatpush1.msra.mxu0 0.0
    %853 = vmatprep.subr.mxu0 0.0
    %854 = vmatpush1.msra.mxu0 0.0
    %855 = vmatprep.subr.mxu0 0.0
    %856 = vmatpush1.msra.mxu0 0.0
    %857 = vmatprep.subr.mxu0 0.0
    %858 = vmatpush1.msra.mxu0 0.0
    %859 = vmatprep.subr.mxu0 0.0
    %860 = vmatpush1.msra.mxu0 0.0
    %861 = vmatprep.subr.mxu0 0.0
    %862 = vmatpush1.msra.mxu0 0.0
    %863 = vmatprep.subr.mxu0 0.0
    %864 = vmatpush1.msra.mxu0 0.0
    %865 = vmatprep.subr.mxu0 0.0
    %866 = vmatpush1.msra.mxu0 0.0
    %867 = vmatprep.mubr.f32.mxu0 0.0
    %868 = vmatmul.mubr.f32.gmra.mrb[0].mxu0 %v801
    %v869 = vpop.f32.mrb[0].mxu0
    %v870 = vadd.f32 0.0, %v869
    %v871 = vpop.f32.mrb[0].mxu0
    %872 = vdwg.mxu0
    %v873 = vadd.f32 %v220, %v870
    %v874 = vmul.f32 %v873, %v235
    %v875 = vxor.u32 %v874, 2147483648
    %v876 = vmul.f32 %v875, 1.442695
    %v877 = vpow.pop %v876
    %v878 = vadd.f32 %v877, 1.0
    %v879 = vrcp.pop %v878
    %v880 = vmul.f32 1.0, %v879
    %v881 = vmul.f32 %v880, %v235
    %v882 = vadd.f32 %v881, %v236
    %v883 = vmul.f32 %v882, %v784
    %885 = vrot.lane.b32.xlu0 %v882, 64
    %v886 = vpop.permute.xlu0 %885
    %v888 = vmul.f32 %v882, %v886
    %890 = vrot.lane.b32.xlu0 %v888, 32
    %v891 = vpop.permute.xlu0 %890
    %v893 = vadd.f32 %v883, %v891
    %v894 = vtanh.pop %v893
    %896 = vrot.lane.b32.xlu0 %v894, 64
    %v897 = vpop.permute.xlu0 %896
    %v899 = vmul.f32 %v882, %v897
    %v902 = vunpack.c.l.s4 1983009808
    %v903 = vunpack.c.0.s8 %v902
    %v904 = vlaneseq
    %v905 = vshrl.u32 %v904, 7
    %v906 = vsub.s32 %v903, %v905
    %v907 = vrot.slane %v899, %v906
    %908 = vrot.lane.b32.xlu0 %v907, 32
    %v909 = vpop.permute.xlu0 %908
    %v910 = vsel %vm243, %v909, 0
    %912 = vmatprep.subr.mxu0 0.0
    %913 = vmatpush1.msra.mxu0 %v239
    %914 = vmatprep.subr.mxu0 0.0
    %915 = vmatpush1.msra.mxu0 %v240
    %916 = vmatprep.subr.mxu0 0.0
    %917 = vmatpush1.msra.mxu0 %v241
    %918 = vmatprep.subr.mxu0 0.0
    %919 = vmatpush1.msra.mxu0 %v242
    %920 = vmatprep.subr.mxu0 0.0
    %921 = vmatpush1.msra.mxu0 0.0
    %922 = vmatprep.subr.mxu0 0.0
    %923 = vmatpush1.msra.mxu0 0.0
    %924 = vmatprep.subr.mxu0 0.0
    %925 = vmatpush1.msra.mxu0 0.0
    %926 = vmatprep.subr.mxu0 0.0
    %927 = vmatpush1.msra.mxu0 0.0
    %928 = vmatprep.subr.mxu0 0.0
    %929 = vmatpush1.msra.mxu0 0.0
    %930 = vmatprep.subr.mxu0 0.0
    %931 = vmatpush1.msra.mxu0 0.0
    %932 = vmatprep.subr.mxu0 0.0
    %933 = vmatpush1.msra.mxu0 0.0
    %934 = vmatprep.subr.mxu0 0.0
    %935 = vmatpush1.msra.mxu0 0.0
    %936 = vmatprep.subr.mxu0 0.0
    %937 = vmatpush1.msra.mxu0 0.0
    %938 = vmatprep.subr.mxu0 0.0
    %939 = vmatpush1.msra.mxu0 0.0
    %940 = vmatprep.subr.mxu0 0.0
    %941 = vmatpush1.msra.mxu0 0.0
    %942 = vmatprep.subr.mxu0 0.0
    %943 = vmatpush1.msra.mxu0 0.0
    %944 = vmatprep.subr.mxu0 0.0
    %945 = vmatpush1.msra.mxu0 0.0
    %946 = vmatprep.subr.mxu0 0.0
    %947 = vmatpush1.msra.mxu0 0.0
    %948 = vmatprep.subr.mxu0 0.0
    %949 = vmatpush1.msra.mxu0 0.0
    %950 = vmatprep.subr.mxu0 0.0
    %951 = vmatpush1.msra.mxu0 0.0
    %952 = vmatprep.subr.mxu0 0.0
    %953 = vmatpush1.msra.mxu0 0.0
    %954 = vmatprep.subr.mxu0 0.0
    %955 = vmatpush1.msra.mxu0 0.0
    %956 = vmatprep.subr.mxu0 0.0
    %957 = vmatpush1.msra.mxu0 0.0
    %958 = vmatprep.subr.mxu0 0.0
    %959 = vmatpush1.msra.mxu0 0.0
    %960 = vmatprep.subr.mxu0 0.0
    %961 = vmatpush1.msra.mxu0 0.0
    %962 = vmatprep.subr.mxu0 0.0
    %963 = vmatpush1.msra.mxu0 0.0
    %964 = vmatprep.subr.mxu0 0.0
    %965 = vmatpush1.msra.mxu0 0.0
    %966 = vmatprep.subr.mxu0 0.0
    %967 = vmatpush1.msra.mxu0 0.0
    %968 = vmatprep.subr.mxu0 0.0
    %969 = vmatpush1.msra.mxu0 0.0
    %970 = vmatprep.subr.mxu0 0.0
    %971 = vmatpush1.msra.mxu0 0.0
    %972 = vmatprep.subr.mxu0 0.0
    %973 = vmatpush1.msra.mxu0 0.0
    %974 = vmatprep.subr.mxu0 0.0
    %975 = vmatpush1.msra.mxu0 0.0
    %976 = vmatprep.mubr.f32.mxu0 0.0
    %977 = vmatmul.mubr.f32.gmra.mrb[0].mxu0 %v910
    %v978 = vpop.f32.mrb[0].mxu0
    %v979 = vadd.f32 0.0, %v978
    %v980 = vpop.f32.mrb[0].mxu0
    %981 = vdwg.mxu0
    %v982 = vadd.f32 %v219, %v979
    %v983 = vmul.f32 %v982, %v235
    %v984 = vxor.u32 %v983, 2147483648
    %v985 = vmul.f32 %v984, 1.442695
    %v986 = vpow.pop %v985
    %v987 = vadd.f32 %v986, 1.0
    %v988 = vrcp.pop %v987
    %v989 = vmul.f32 1.0, %v988
    %v990 = vmul.f32 %v989, %v235
    %v991 = vadd.f32 %v990, %v236
    %v992 = vmul.f32 %v991, %v893
    %994 = vrot.lane.b32.xlu0 %v991, 64
    %v995 = vpop.permute.xlu0 %994
    %v997 = vmul.f32 %v991, %v995
    %999 = vrot.lane.b32.xlu0 %v997, 32
    %v1000 = vpop.permute.xlu0 %999
    %v1002 = vadd.f32 %v992, %v1000
    %v1003 = vtanh.pop %v1002
    %1005 = vrot.lane.b32.xlu0 %v1003, 64
    %v1006 = vpop.permute.xlu0 %1005
    %v1008 = vmul.f32 %v991, %v1006
    %v1011 = vunpack.c.l.s4 1983009808
    %v1012 = vunpack.c.0.s8 %v1011
    %v1013 = vlaneseq
    %v1014 = vshrl.u32 %v1013, 7
    %v1015 = vsub.s32 %v1012, %v1014
    %v1016 = vrot.slane %v1008, %v1015
    %1017 = vrot.lane.b32.xlu0 %v1016, 32
    %v1018 = vpop.permute.xlu0 %1017
    %v1019 = vsel %vm243, %v1018, 0
    %1021 = vmatprep.subr.mxu0 0.0
    %1022 = vmatpush1.msra.mxu0 %v239
    %1023 = vmatprep.subr.mxu0 0.0
    %1024 = vmatpush1.msra.mxu0 %v240
    %1025 = vmatprep.subr.mxu0 0.0
    %1026 = vmatpush1.msra.mxu0 %v241
    %1027 = vmatprep.subr.mxu0 0.0
    %1028 = vmatpush1.msra.mxu0 %v242
    %1029 = vmatprep.subr.mxu0 0.0
    %1030 = vmatpush1.msra.mxu0 0.0
    %1031 = vmatprep.subr.mxu0 0.0
    %1032 = vmatpush1.msra.mxu0 0.0
    %1033 = vmatprep.subr.mxu0 0.0
    %1034 = vmatpush1.msra.mxu0 0.0
    %1035 = vmatprep.subr.mxu0 0.0
    %1036 = vmatpush1.msra.mxu0 0.0
    %1037 = vmatprep.subr.mxu0 0.0
    %1038 = vmatpush1.msra.mxu0 0.0
    %1039 = vmatprep.subr.mxu0 0.0
    %1040 = vmatpush1.msra.mxu0 0.0
    %1041 = vmatprep.subr.mxu0 0.0
    %1042 = vmatpush1.msra.mxu0 0.0
    %1043 = vmatprep.subr.mxu0 0.0
    %1044 = vmatpush1.msra.mxu0 0.0
    %1045 = vmatprep.subr.mxu0 0.0
    %1046 = vmatpush1.msra.mxu0 0.0
    %1047 = vmatprep.subr.mxu0 0.0
    %1048 = vmatpush1.msra.mxu0 0.0
    %1049 = vmatprep.subr.mxu0 0.0
    %1050 = vmatpush1.msra.mxu0 0.0
    %1051 = vmatprep.subr.mxu0 0.0
    %1052 = vmatpush1.msra.mxu0 0.0
    %1053 = vmatprep.subr.mxu0 0.0
    %1054 = vmatpush1.msra.mxu0 0.0
    %1055 = vmatprep.subr.mxu0 0.0
    %1056 = vmatpush1.msra.mxu0 0.0
    %1057 = vmatprep.subr.mxu0 0.0
    %1058 = vmatpush1.msra.mxu0 0.0
    %1059 = vmatprep.subr.mxu0 0.0
    %1060 = vmatpush1.msra.mxu0 0.0
    %1061 = vmatprep.subr.mxu0 0.0
    %1062 = vmatpush1.msra.mxu0 0.0
    %1063 = vmatprep.subr.mxu0 0.0
    %1064 = vmatpush1.msra.mxu0 0.0
    %1065 = vmatprep.subr.mxu0 0.0
    %1066 = vmatpush1.msra.mxu0 0.0
    %1067 = vmatprep.subr.mxu0 0.0
    %1068 = vmatpush1.msra.mxu0 0.0
    %1069 = vmatprep.subr.mxu0 0.0
    %1070 = vmatpush1.msra.mxu0 0.0
    %1071 = vmatprep.subr.mxu0 0.0
    %1072 = vmatpush1.msra.mxu0 0.0
    %1073 = vmatprep.subr.mxu0 0.0
    %1074 = vmatpush1.msra.mxu0 0.0
    %1075 = vmatprep.subr.mxu0 0.0
    %1076 = vmatpush1.msra.mxu0 0.0
    %1077 = vmatprep.subr.mxu0 0.0
    %1078 = vmatpush1.msra.mxu0 0.0
    %1079 = vmatprep.subr.mxu0 0.0
    %1080 = vmatpush1.msra.mxu0 0.0
    %1081 = vmatprep.subr.mxu0 0.0
    %1082 = vmatpush1.msra.mxu0 0.0
    %1083 = vmatprep.subr.mxu0 0.0
    %1084 = vmatpush1.msra.mxu0 0.0
    %1085 = vmatprep.mubr.f32.mxu0 0.0
    %1086 = vmatmul.mubr.f32.gmra.mrb[0].mxu0 %v1019
    %v1087 = vpop.f32.mrb[0].mxu0
    %v1088 = vadd.f32 0.0, %v1087
    %v1089 = vpop.f32.mrb[0].mxu0
    %1090 = vdwg.mxu0
    %v1091 = vadd.f32 %v221, %v1088
    %v1092 = vmul.f32 %v1091, %v235
    %v1093 = vxor.u32 %v1092, 2147483648
    %v1094 = vmul.f32 %v1093, 1.442695
    %v1095 = vpow.pop %v1094
    %v1096 = vadd.f32 %v1095, 1.0
    %v1097 = vrcp.pop %v1096
    %v1098 = vmul.f32 1.0, %v1097
    %v1099 = vmul.f32 %v1098, %v235
    %v1100 = vadd.f32 %v1099, %v236
    %v1101 = vmul.f32 %v1100, %v1002
    %1103 = vrot.lane.b32.xlu0 %v1100, 64
    %v1104 = vpop.permute.xlu0 %1103
    %v1106 = vmul.f32 %v1100, %v1104
    %1108 = vrot.lane.b32.xlu0 %v1106, 32
    %v1109 = vpop.permute.xlu0 %1108
    %v1111 = vadd.f32 %v1101, %v1109
    %v1112 = vtanh.pop %v1111
    %1114 = vrot.lane.b32.xlu0 %v1112, 64
    %v1115 = vpop.permute.xlu0 %1114
    %v1117 = vmul.f32 %v1100, %v1115
    %v1120 = vunpack.c.l.s4 1983009808
    %v1121 = vunpack.c.0.s8 %v1120
    %v1122 = vlaneseq
    %v1123 = vshrl.u32 %v1122, 7
    %v1124 = vsub.s32 %v1121, %v1123
    %v1125 = vrot.slane %v1117, %v1124
    %1126 = vrot.lane.b32.xlu0 %v1125, 32
    %v1127 = vpop.permute.xlu0 %1126
    %vm1129 = vcmask 254976
    %1130 = vst.msk [vmem:[#allocation11] sm:$0x3] %vm1129, %v1127
    %v1133 = vunpack.c.l.s4 1983009808
    %v1134 = vunpack.c.0.s8 %v1133
    %v1135 = vlaneseq
    %v1136 = vshrl.u32 %v1135, 7
    %v1137 = vsub.s32 %v1134, %v1136
    %v1138 = vrot.slane %v1111, %v1137
    %1139 = vrot.lane.b32.xlu0 %v1138, 96
    %v1140 = vpop.permute.xlu0 %1139
    %1142 = vst.msk [vmem:[#allocation13] sm:$0x3] %vm1129, %v1140
    %v1143 = vcombine.low %v463, %v463
    %v1145 = vunpack.c.l.s4 1983009808
    %v1146 = vunpack.c.0.s8 %v1145
    %v1147 = vlaneseq
    %v1148 = vshrl.u32 %v1147, 7
    %v1149 = vsub.s32 %v1146, %v1148
    %v1150 = vrot.slane %v1143, %v1149
    %v1152 = vcombine.low %v580, %v580
    %v1154 = vcombine.low %v681, %v681
    %v1156 = vunpack.c.l.s4 1983009808
    %v1157 = vunpack.c.0.s8 %v1156
    %v1158 = vlaneseq
    %v1159 = vshrl.u32 %v1158, 7
    %v1160 = vsub.s32 %v1157, %v1159
    %v1161 = vrot.slane %v1154, %v1160
    %v1162 = vcombine.low %v1161, %v1161
    %v1164 = vcombine.low %v899, %v899
    %v1166 = vunpack.c.l.s4 1983009808
    %v1167 = vunpack.c.0.s8 %v1166
    %v1168 = vlaneseq
    %v1169 = vshrl.u32 %v1168, 7
    %v1170 = vsub.s32 %v1167, %v1169
    %v1171 = vrot.slane %v1164, %v1170
    %v1173 = vcombine.low %v1016, %v1016
    %v1175 = vcombine.low %v1117, %v1117
    %v1177 = vunpack.c.l.s4 1983009808
    %v1178 = vunpack.c.0.s8 %v1177
    %v1179 = vlaneseq
    %v1180 = vshrl.u32 %v1179, 7
    %v1181 = vsub.s32 %v1178, %v1180
    %v1182 = vrot.slane %v1175, %v1181
    %v1183 = vcombine.low %v1182, %v1182
    %vm1185 = vcmask 1041408
    %v1186 = vsel %vm1185, %v354, %v1150
    %vm1187 = vcmask 1043456
    %v1188 = vsel %vm1187, %v1186, %v1152
    %vm1189 = vcmask 1045504
    %v1190 = vsel %vm1189, %v1188, %v1162
    %v1191 = vsel %vm1185, %v790, %v1171
    %v1192 = vsel %vm1187, %v1191, %v1173
    %v1193 = vsel %vm1189, %v1192, %v1183
    %v1194 = vld [vmem:[#allocation8] sm:$0xff]
    %v1195 = vld [vmem:[#allocation8 + $0x8] sm:$0xff]
    %v1196 = vld [vmem:[#allocation8 + $0x10] sm:$0xff]
    %v1197 = vld [vmem:[#allocation8 + $0x18] sm:$0xff]
    %v1198 = vld [vmem:[%s7] sm:$0x1]
    %v1200 = vlaneseq
    %v1201 = vshrl.u32 %v1200, 7
    %v1202 = vsub.s32 0, %v1201
    %v1203 = vrot.slane %v1198, %v1202
    %1207 = vrot.lane.b32.xlu0 %v1190, 32
    %v1208 = vpop.permute.xlu0 %1207
    %1209 = vrot.lane.b32.xlu0 %v1193, 32
    %v1210 = vpop.permute.xlu0 %1209
    %v1211 = vsel %vm243, %v1208, 0
    %v1213 = vsel %vm243, %v1210, 0
    %1215 = vmatprep.subr.mxu0 0.0
    %1216 = vmatpush1.msra.mxu0 %v1194
    %1217 = vmatprep.subr.mxu0 0.0
    %1218 = vmatpush1.msra.mxu0 %v1195
    %1219 = vmatprep.subr.mxu0 0.0
    %1220 = vmatpush1.msra.mxu0 %v1196
    %1221 = vmatprep.subr.mxu0 0.0
    %1222 = vmatpush1.msra.mxu0 %v1197
    %1223 = vmatprep.subr.mxu0 0.0
    %1224 = vmatpush1.msra.mxu0 0.0
    %1225 = vmatprep.subr.mxu0 0.0
    %1226 = vmatpush1.msra.mxu0 0.0
    %1227 = vmatprep.subr.mxu0 0.0
    %1228 = vmatpush1.msra.mxu0 0.0
    %1229 = vmatprep.subr.mxu0 0.0
    %1230 = vmatpush1.msra.mxu0 0.0
    %1231 = vmatprep.subr.mxu0 0.0
    %1232 = vmatpush1.msra.mxu0 0.0
    %1233 = vmatprep.subr.mxu0 0.0
    %1234 = vmatpush1.msra.mxu0 0.0
    %1235 = vmatprep.subr.mxu0 0.0
    %1236 = vmatpush1.msra.mxu0 0.0
    %1237 = vmatprep.subr.mxu0 0.0
    %1238 = vmatpush1.msra.mxu0 0.0
    %1239 = vmatprep.subr.mxu0 0.0
    %1240 = vmatpush1.msra.mxu0 0.0
    %1241 = vmatprep.subr.mxu0 0.0
    %1242 = vmatpush1.msra.mxu0 0.0
    %1243 = vmatprep.subr.mxu0 0.0
    %1244 = vmatpush1.msra.mxu0 0.0
    %1245 = vmatprep.subr.mxu0 0.0
    %1246 = vmatpush1.msra.mxu0 0.0
    %1247 = vmatprep.subr.mxu0 0.0
    %1248 = vmatpush1.msra.mxu0 0.0
    %1249 = vmatprep.subr.mxu0 0.0
    %1250 = vmatpush1.msra.mxu0 0.0
    %1251 = vmatprep.subr.mxu0 0.0
    %1252 = vmatpush1.msra.mxu0 0.0
    %1253 = vmatprep.subr.mxu0 0.0
    %1254 = vmatpush1.msra.mxu0 0.0
    %1255 = vmatprep.subr.mxu0 0.0
    %1256 = vmatpush1.msra.mxu0 0.0
    %1257 = vmatprep.subr.mxu0 0.0
    %1258 = vmatpush1.msra.mxu0 0.0
    %1259 = vmatprep.subr.mxu0 0.0
    %1260 = vmatpush1.msra.mxu0 0.0
    %1261 = vmatprep.subr.mxu0 0.0
    %1262 = vmatpush1.msra.mxu0 0.0
    %1263 = vmatprep.subr.mxu0 0.0
    %1264 = vmatpush1.msra.mxu0 0.0
    %1265 = vmatprep.subr.mxu0 0.0
    %1266 = vmatpush1.msra.mxu0 0.0
    %1267 = vmatprep.subr.mxu0 0.0
    %1268 = vmatpush1.msra.mxu0 0.0
    %1269 = vmatprep.subr.mxu0 0.0
    %1270 = vmatpush1.msra.mxu0 0.0
    %1271 = vmatprep.subr.mxu0 0.0
    %1272 = vmatpush1.msra.mxu0 0.0
    %1273 = vmatprep.subr.mxu0 0.0
    %1274 = vmatpush1.msra.mxu0 0.0
    %1275 = vmatprep.subr.mxu0 0.0
    %1276 = vmatpush1.msra.mxu0 0.0
    %1277 = vmatprep.subr.mxu0 0.0
    %1278 = vmatpush1.msra.mxu0 0.0
    %1279 = vmatprep.mubr.f32.mxu0 0.0
    %1280 = vmatmul.mubr.f32.gmra.mrb[0].mxu0 %v1211
    %v1281 = vpop.f32.mrb[0].mxu0
    %v1282 = vadd.f32 %v1203, %v1281
    %v1283 = vpop.f32.mrb[0].mxu0
    %1284 = vmatprep.mubr.f32.mxu0 0.0
    %1285 = vmatmul.mubr.f32.gmra.mrb[0].mxu0 %v1213
    %v1286 = vpop.f32.mrb[0].mxu0
    %v1287 = vadd.f32 %v1203, %v1286
    %v1288 = vpop.f32.mrb[0].mxu0
    %1289 = vdwg.mxu0
    %1290 = vst [vmem:[#allocation10] sm:$0xff] %v1282
    %1291 = vst [vmem:[#allocation10 + $0x8] sm:$0xff] %v1287
    // Predicated region
    $region50: #{tpu_custom_call.1} parent=1 // pred_check
      _
    $region51: #{tpu_custom_call.1} parent=1 // pred_check_branch
      %1293 = sbr.rel (0) target = $region53
    $region52: #{tpu_custom_call.1} parent=1 // pred_region
      %s1295 = ssub.s32 256, 256
      %1296 = vsyncadd [#allocation4], %s1295
      %s1297 = sshll.u32 [#allocation10], 4
      %s1298 = int_to_ptr.vmem [resolvable:$true] %s1297
      %1303 = dma.vmem_to_hbm [thread:$0]  %s1298, 256, %s8, [#allocation4], 128, 128, 8
    $region53: #{tpu_custom_call.1} parent=1 // pred_fallthru
      _
    // Predicated region
    $region54: #{tpu_custom_call.1} parent=1 // pred_check
      _
    $region55: #{tpu_custom_call.1} parent=1 // pred_check_branch
      %1305 = sbr.rel (0) target = $region57
    $region56: #{tpu_custom_call.1} parent=1 // pred_region
      %s1307 = ssub.s32 32, 32
      %1308 = vsyncadd [#allocation12], %s1307
      %s1310 = sshll.u32 [#allocation11], 4
      %s1311 = int_to_ptr.vmem [resolvable:$true] %s1310
      %1313 = dma.vmem_to_hbm [thread:$0]  %s1311, 32, %s9, [#allocation12]
    $region57: #{tpu_custom_call.1} parent=1 // pred_fallthru
      _
    // Predicated region
    $region58: #{tpu_custom_call.1} parent=1 // pred_check
      _
    $region59: #{tpu_custom_call.1} parent=1 // pred_check_branch
      %1315 = sbr.rel (0) target = $region61
    $region60: #{tpu_custom_call.1} parent=1 // pred_region
      %s1317 = ssub.s32 32, 32
      %1318 = vsyncadd [#allocation12], %s1317
      %s1320 = sshll.u32 [#allocation13], 4
      %s1321 = int_to_ptr.vmem [resolvable:$true] %s1320
      %1323 = dma.vmem_to_hbm [thread:$0]  %s1321, 32, %s10, [#allocation12]
    $region61: #{tpu_custom_call.1} parent=1 // pred_fallthru
      _
    // Predicated region
    $region62: #{tpu_custom_call.1} parent=1 // pred_check
      _
    $region63: #{tpu_custom_call.1} parent=1 // pred_check_branch
      %1325 = sbr.rel (0) target = $region65
    $region64: #{tpu_custom_call.1} parent=1 // pred_region
      %1326 = dma.done [#allocation4], 256
    $region65: #{tpu_custom_call.1} parent=1 // pred_fallthru
      _
    // Predicated region
    $region66: #{tpu_custom_call.1} parent=1 // pred_check
      _
    $region67: #{tpu_custom_call.1} parent=1 // pred_check_branch
      %1328 = sbr.rel (0) target = $region69
    $region68: #{tpu_custom_call.1} parent=1 // pred_region
      %1329 = dma.done [#allocation12], 32
    $region69: #{tpu_custom_call.1} parent=1 // pred_fallthru
      _
    // Predicated region
    $region70: #{tpu_custom_call.1} parent=1 // pred_check
      _
    $region71: #{tpu_custom_call.1} parent=1 // pred_check_branch
      %1331 = sbr.rel (0) target = $region73
    $region72: #{tpu_custom_call.1} parent=1 // pred_region
      %1332 = dma.done [#allocation12], 32
    $region73: #{tpu_custom_call.1} parent=1 // pred_fallthru
      _
    %1333 = vsyncpa [#allocation3], 1
    %1334 = vsyncpa [#allocation6], 1
    %1335 = vsyncpa [#allocation9], 1
    %1336 = vsyncpa [#allocation4], 1
    %1337 = vsyncpa [#allocation12], 1

</llo_original>
